<compile_context>
chip_gen: v6e
topology: v6e:2x2x1
jax: 0.10.0
libtpu: 0.0.40
codegen_flags: <defaults>
</compile_context>

<pallas_src>
import math

import jax
import jax.numpy as jnp
import numpy as np
from jax.experimental import pallas as pl
from jax.experimental.pallas import tpu as pltpu

EMBED = 96              # MultiheadAttention embed dim
HEADS = 6               # num heads
HDIM = EMBED // HEADS   # 16
DP = 128                # channel dim padded to a full lane width
TQ = 256                # query tile (sublanes)
TK = 256                # key tile (== TQ so a query tile always overlaps itself)
TX = 512                # kernel-1 row tile (qkv projection)
OUT_SUB = 8             # score replicated over 8 sublanes (min aligned store)
NEG = -1e30


# ---------------------------------------------------------------------------
# Kernel 1: fused QKV projection.  x (TX,128) @ w_in (128,384) -> q/k/v slabs
# at lane offsets 0 / 128 / 256 (all slices 128-aligned).
# ---------------------------------------------------------------------------
def _qkv_proj_kernel(x_ref, w_in_ref, b_in_ref, q_ref, k_ref, v_ref):
    qkv = jnp.dot(x_ref[...], w_in_ref[...],
                  preferred_element_type=jnp.float32) + b_in_ref[...]
    q_ref[...] = qkv[:, 0 * DP:1 * DP].astype(q_ref.dtype)
    k_ref[...] = qkv[:, 1 * DP:2 * DP].astype(k_ref.dtype)
    v_ref[...] = qkv[:, 2 * DP:3 * DP].astype(v_ref.dtype)


# ---------------------------------------------------------------------------
# Kernel 2: group-masked flash attention + out-proj + Linear(96,1) + Sigmoid.
# Grid = (query tiles, pruned key-tile window); per-head online softmax state
# in VMEM scratch.  Scalar-prefetched kv_start/kv_count drive the k/v/g_col
# index maps so only overlapping key tiles are visited.
# ---------------------------------------------------------------------------
def _attn_cls_kernel(kv_start_ref, kv_count_ref,
                     g_row_ref, g_col_ref, q_ref, k_ref, v_ref,
                     w_out_ref, b_out_ref, w_cls_ref, b_cls_ref,
                     out_ref, m_sc, l_sc, acc_sc):
    qi = pl.program_id(0)
    ki = pl.program_id(1)

    @pl.when(ki == 0)
    def _init():
        m_sc[...] = jnp.full_like(m_sc, NEG)
        l_sc[...] = jnp.zeros_like(l_sc)
        acc_sc[...] = jnp.zeros_like(acc_sc)

    # Skip steps beyond this query tile's key-tile window (no compute; the
    # clamped block index repeats so the pipeline does not re-fetch either).
    @pl.when(ki < kv_count_ref[qi])
    def _compute():
        # Group mask with no in-kernel transpose: row ids (TQ,1) vs col ids (1,TK).
        mask = g_row_ref[...] == g_col_ref[...]                 # (TQ, TK) bool
        bias = jnp.where(mask, 0.0, NEG).astype(jnp.float32)    # hoisted once

        q = q_ref[...]                                          # (TQ, 128) bf16
        k = k_ref[...]                                          # (TK, 128) bf16
        v = v_ref[...]                                          # (TK, 128) bf16

        scale = 1.0 / math.sqrt(HDIM)
        # Static unroll: each iteration ends with stores into the per-head
        # scratch slices, so no (TQ,TK) temporary lives across iterations.
        for h in range(HEADS):
            lo = h * HDIM
            qh, kh, vh = q[:, lo:lo + HDIM], k[:, lo:lo + HDIM], v[:, lo:lo + HDIM]
            # scores: contract last dims of q_h and k_h directly (no explicit .T)
            s = jax.lax.dot_general(qh, kh, (((1,), (1,)), ((), ())),
                                    preferred_element_type=jnp.float32)
            s = s * scale + bias
            m_prev = m_sc[h]                                    # (TQ, 1)
            m_new = jnp.maximum(m_prev, jnp.max(s, axis=-1, keepdims=True))
            # Masked entries are forced to exactly 0 so rows whose group does
            # not appear in this key tile cannot pollute the accumulator even
            # while m is still at its -1e30 init.
            p = jnp.where(mask, jnp.exp(s - m_new), 0.0)        # (TQ, TK) f32
            alpha = jnp.exp(m_prev - m_new)                     # (TQ, 1)
            l_sc[h] = alpha * l_sc[h] + jnp.sum(p, axis=-1, keepdims=True)
            acc_sc[h] = alpha * acc_sc[h] + jnp.dot(
                p.astype(jnp.bfloat16), vh, preferred_element_type=jnp.float32)
            m_sc[h] = m_new

    @pl.when(ki == pl.num_programs(1) - 1)
    def _finalize():
        # Per-head out-projection accumulate: no lane concat of head contexts.
        w_out = w_out_ref[...]                                  # (96, 128) bf16
        attn_out = jnp.broadcast_to(b_out_ref[...], (TQ, DP))   # f32
        for h in range(HEADS):
            inv_l = pl.reciprocal(l_sc[h], approx=True)         # (TQ, 1)
            ctx_h = (acc_sc[h] * inv_l).astype(jnp.bfloat16)    # (TQ, 16)
            w_h = w_out[h * HDIM:(h + 1) * HDIM, :]             # (16, 128)
            attn_out = attn_out + jnp.dot(ctx_h, w_h,
                                          preferred_element_type=jnp.float32)
        # Classifier as a tiny MXU matvec producing a lane-dense (1, TQ) row
        # of logits: w_cls (1,128) contracted against attn_out (TQ,128).
        logit = jax.lax.dot_general(w_cls_ref[...], attn_out,
                                    (((1,), (1,)), ((), ())),
                                    preferred_element_type=jnp.float32)
        logit = logit + b_cls_ref[...]                          # (1, TQ)
        score = jax.nn.sigmoid(logit)
        # Compact output slab: score broadcast over 8 sublanes only.
        out_ref[...] = jnp.broadcast_to(score, (OUT_SUB, TQ))


# ---------------------------------------------------------------------------
# Wrapper
# ---------------------------------------------------------------------------
def set_resnet_head(scatter_features, group, params):
    """Group-masked MHA + Linear(96,1) + Sigmoid. Returns scores of shape (N,)."""
    N, D = scatter_features.shape
    assert D == EMBED

    # ---- host-side group preprocessing (sort + key-tile windows) -----------
    group_np = np.asarray(group, dtype=np.int32)
    order_np = np.argsort(group_np, kind="stable")
    inv_order_np = np.empty_like(order_np)
    inv_order_np[order_np] = np.arange(N, dtype=order_np.dtype)
    g_sorted_np = group_np[order_np]
    pad_id = int(group_np.max()) + 1

    n_pad = ((N + TX - 1) // TX) * TX          # multiple of TX (and of TQ/TK)
    n_q = n_pad // TQ
    n_k = n_pad // TK

    g_pad_np = np.full((n_pad,), pad_id, dtype=np.int32)
    g_pad_np[:N] = g_sorted_np

    # Per-tile group ranges -> contiguous key-tile window per query tile.
    t_min = g_pad_np.reshape(n_k, TK).min(axis=1)
    t_max = g_pad_np.reshape(n_k, TK).max(axis=1)
    overlap = (t_min[None, :] <= t_max[:, None]) & (t_max[None, :] >= t_min[:, None])
    kv_start_np = overlap.argmax(axis=1).astype(np.int32)      # (n_q,)
    kv_count_np = overlap.sum(axis=1).astype(np.int32)         # (n_q,) >= 1
    max_count = int(kv_count_np.max())

    # ---- features sorted by group, padded to (n_pad, 128) ------------------
    order = jnp.asarray(order_np)
    x_sorted = scatter_features.astype(jnp.bfloat16)[order]
    x_pad = jnp.zeros((n_pad, DP), jnp.bfloat16).at[:N, :EMBED].set(x_sorted)

    g_pad = jnp.asarray(g_pad_np)
    g_row = g_pad.reshape(n_pad, 1)
    g_col = g_pad.reshape(1, n_pad)
    kv_start = jnp.asarray(kv_start_np)
    kv_count = jnp.asarray(kv_count_np)

    # ---- weights: pre-transposed, zero-padded, q/k/v in separate 128 slabs --
    w_in = jnp.asarray(params["w_in"], jnp.float32)      # (288, 96) torch layout
    b_in = jnp.asarray(params["b_in"], jnp.float32)      # (288,)
    w_in_p = jnp.zeros((DP, 3 * DP), jnp.float32)
    b_in_p = jnp.zeros((1, 3 * DP), jnp.float32)
    for i in range(3):                                   # q, k, v slabs
        w_in_p = w_in_p.at[:EMBED, i * DP:i * DP + EMBED].set(
            w_in[i * EMBED:(i + 1) * EMBED, :].T)
        b_in_p = b_in_p.at[0, i * DP:i * DP + EMBED].set(
            b_in[i * EMBED:(i + 1) * EMBED])
    w_in_p = w_in_p.astype(jnp.bfloat16)

    w_out_p = jnp.zeros((EMBED, DP), jnp.float32).at[:, :EMBED].set(
        jnp.asarray(params["w_out"], jnp.float32).T).astype(jnp.bfloat16)
    b_out_p = jnp.zeros((1, DP), jnp.float32).at[0, :EMBED].set(
        jnp.asarray(params["b_out"], jnp.float32))
    w_cls_p = jnp.zeros((1, DP), jnp.float32).at[0, :EMBED].set(
        jnp.asarray(params["w_cls"], jnp.float32).reshape(-1))
    b_cls_p = jnp.asarray(params["b_cls"], jnp.float32).reshape(1, 1)

    # ---- kernel 1: fused qkv projection (512-row tiles) ---------------------
    q, k, v = pl.pallas_call(
        _qkv_proj_kernel,
        out_shape=tuple(jax.ShapeDtypeStruct((n_pad, DP), jnp.bfloat16)
                        for _ in range(3)),
        grid=(n_pad // TX,),
        in_specs=[pl.BlockSpec((TX, DP), lambda i: (i, 0)),
                  pl.BlockSpec((DP, 3 * DP), lambda i: (0, 0)),
                  pl.BlockSpec((1, 3 * DP), lambda i: (0, 0))],
        out_specs=tuple(pl.BlockSpec((TX, DP), lambda i: (i, 0))
                        for _ in range(3)),
        compiler_params=pltpu.CompilerParams(
            dimension_semantics=("parallel",)),
    )(x_pad, w_in_p, b_in_p)

    # ---- kernel 2: pruned group-masked flash attention + out-proj + cls ----
    def _kv_idx(qi, ki, start_ref, count_ref):
        return (jnp.minimum(start_ref[qi] + ki, n_k - 1), 0)

    def _gcol_idx(qi, ki, start_ref, count_ref):
        return (0, jnp.minimum(start_ref[qi] + ki, n_k - 1))

    out = pl.pallas_call(
        _attn_cls_kernel,
        out_shape=jax.ShapeDtypeStruct((n_q * OUT_SUB, TQ), jnp.float32),
        grid_spec=pltpu.PrefetchScalarGridSpec(
            num_scalar_prefetch=2,
            grid=(n_q, max_count),
            in_specs=[
                pl.BlockSpec((TQ, 1), lambda qi, ki, s, c: (qi, 0)),      # g_row
                pl.BlockSpec((1, TK), _gcol_idx),                         # g_col
                pl.BlockSpec((TQ, DP), lambda qi, ki, s, c: (qi, 0)),     # q
                pl.BlockSpec((TK, DP), _kv_idx),                          # k
                pl.BlockSpec((TK, DP), _kv_idx),                          # v
                pl.BlockSpec((EMBED, DP), lambda qi, ki, s, c: (0, 0)),   # w_out
                pl.BlockSpec((1, DP), lambda qi, ki, s, c: (0, 0)),       # b_out
                pl.BlockSpec((1, DP), lambda qi, ki, s, c: (0, 0)),       # w_cls
                pl.BlockSpec((1, 1), lambda qi, ki, s, c: (0, 0)),        # b_cls
            ],
            out_specs=pl.BlockSpec((OUT_SUB, TQ), lambda qi, ki, s, c: (qi, 0)),
            scratch_shapes=[pltpu.VMEM((HEADS, TQ, 1), jnp.float32),      # m
                            pltpu.VMEM((HEADS, TQ, 1), jnp.float32),      # l
                            pltpu.VMEM((HEADS, TQ, HDIM), jnp.float32)],  # acc
        ),
        compiler_params=pltpu.CompilerParams(
            dimension_semantics=("parallel", "arbitrary")),
    )(kv_start, kv_count, g_row, g_col, q, k, v,
      w_out_p, b_out_p, w_cls_p, b_cls_p)

    # one score row per query tile (take sublane 0), undo padding + group sort
    scores_sorted = out.reshape(n_q, OUT_SUB, TQ)[:, 0, :].reshape(n_pad)[:N]
    return scores_sorted[jnp.asarray(inv_order_np)]   # .squeeze(-1) as in torch


# ---------------------------------------------------------------------------
# Pure-JAX/numpy reference (mirrors the torch forward: loop over unique groups,
# nn.MultiheadAttention semantics, then Linear + Sigmoid).
# ---------------------------------------------------------------------------
def _mha_ref(x, params):
    qkv = x @ params["w_in"].T + params["b_in"]
    q, k, v = jnp.split(qkv, 3, axis=-1)
    outs = []
    for h in range(HEADS):
        lo, hi = h * HDIM, (h + 1) * HDIM
        qh = q[:, lo:hi] / math.sqrt(HDIM)
        s = qh @ k[:, lo:hi].T
        p = jax.nn.softmax(s, axis=-1)
        outs.append(p @ v[:, lo:hi])
    ctx = jnp.concatenate(outs, axis=-1)
    return ctx @ params["w_out"].T + params["b_out"]


def reference_forward(scatter_features, group_np, params):
    N = scatter_features.shape[0]
    all_related = np.zeros((N, EMBED), dtype=np.float32)
    for g in np.unique(group_np):
        idx = group_np == g
        rel = _mha_ref(scatter_features[idx], params)
        all_related[idx] = np.asarray(rel)
    logits = all_related @ np.asarray(params["w_cls"]).T + np.asarray(params["b_cls"])
    return jax.nn.sigmoid(jnp.asarray(logits))[:, 0]


if __name__ == "__main__":
    key = jax.random.PRNGKey(0)
    k_feat, k_win, k_bin, k_wout, k_bout, k_wcls, k_bcls = jax.random.split(key, 7)

    # N > 256 so the multi-key-tile accumulation path, groups straddling the
    # 256-row tile boundary, the padded rows and the pruning windows are all
    # exercised; 40 groups of 15 clusters, shuffled so the sort path runs too.
    N = 600
    NUM_GROUPS = 40

    # Synthetic backbone output (stands in for MinkUNet14 + global max pool, dim 96).
    scatter_features = jax.random.normal(k_feat, (N, EMBED), dtype=jnp.float32)

    rng = np.random.RandomState(0)
    group_np = rng.permutation(
        np.repeat(np.arange(NUM_GROUPS, dtype=np.int32), N // NUM_GROUPS))
    group = jnp.asarray(group_np)

    # Deterministic parameter init (shapes from nn.MultiheadAttention(96, 6)
    # and nn.Linear(96, 1)).
    params = {
        "w_in":  0.05 * jax.random.normal(k_win,  (3 * EMBED, EMBED), dtype=jnp.float32),
        "b_in":  0.01 * jax.random.normal(k_bin,  (3 * EMBED,), dtype=jnp.float32),
        "w_out": 0.05 * jax.random.normal(k_wout, (EMBED, EMBED), dtype=jnp.float32),
        "b_out": 0.01 * jax.random.normal(k_bout, (EMBED,), dtype=jnp.float32),
        "w_cls": 0.05 * jax.random.normal(k_wcls, (1, EMBED), dtype=jnp.float32),
        "b_cls": 0.01 * jax.random.normal(k_bcls, (1,), dtype=jnp.float32),
    }

    cluster_scores = jax.block_until_ready(set_resnet_head(scatter_features, group, params))

    ref = reference_forward(np.asarray(scatter_features), group_np, params)
    # bf16 MXU operands + approx reciprocal -> slightly looser tolerance.
    np.testing.assert_allclose(np.asarray(cluster_scores), np.asarray(ref),
                               rtol=2e-2, atol=2e-2)

    print("KERNEL_OK")
</pallas_src>

<mosaic_0001>
module attributes {stable_mosaic.version = 11 : i64} {
  func.func @_qkv_proj_kernel(%arg0: i32, %arg1: memref<512x128xbf16, #tpu.memory_space<vmem>>, %arg2: memref<128x384xbf16, #tpu.memory_space<vmem>>, %arg3: memref<1x384xf32, #tpu.memory_space<vmem>>, %arg4: memref<512x128xbf16, #tpu.memory_space<vmem>>, %arg5: memref<512x128xbf16, #tpu.memory_space<vmem>>, %arg6: memref<512x128xbf16, #tpu.memory_space<vmem>>) attributes {dimension_semantics = [#tpu.dimension_semantics<parallel>], iteration_bounds = array<i64: 2>, scalar_prefetch = 0 : i64, scratch_operands = 0 : i64, tpu.core_type = #tpu.core_type<tc>, window_params = [{transform_indices = @transform_0, window_bounds = array<i64: 512, 128>}, {pipeline_mode = #tpu.pipeline_mode<synchronous>, transform_indices = @transform_1, window_bounds = array<i64: 128, 384>}, {pipeline_mode = #tpu.pipeline_mode<synchronous>, transform_indices = @transform_2, window_bounds = array<i64: 1, 384>}, {transform_indices = @transform_3, window_bounds = array<i64: 512, 128>}, {transform_indices = @transform_4, window_bounds = array<i64: 512, 128>}, {transform_indices = @transform_5, window_bounds = array<i64: 512, 128>}]} {
    %c0 = arith.constant 0 : index
    %c0_0 = arith.constant 0 : index
    %0 = vector.load %arg1[%c0, %c0_0] : memref<512x128xbf16, #tpu.memory_space<vmem>>, vector<512x128xbf16>
    %c0_1 = arith.constant 0 : index
    %c0_2 = arith.constant 0 : index
    %1 = vector.load %arg2[%c0_1, %c0_2] : memref<128x384xbf16, #tpu.memory_space<vmem>>, vector<128x384xbf16>
    %cst = arith.constant dense<0.000000e+00> : vector<512x384xf32>
    %2 = tpu.matmul %0, %1, %cst {dimension_numbers = #tpu.dot_dimension_numbers<[1], [0], [0], [1], [0, 0, 1, 1], [], []>} : vector<512x128xbf16>, vector<128x384xbf16>, vector<512x384xf32> -> vector<512x384xf32>
    %c0_3 = arith.constant 0 : index
    %c0_4 = arith.constant 0 : index
    %3 = vector.load %arg3[%c0_3, %c0_4] : memref<1x384xf32, #tpu.memory_space<vmem>>, vector<1x384xf32>
    %4 = vector.broadcast %3 : vector<1x384xf32> to vector<512x384xf32>
    %5 = arith.addf %2, %4 : vector<512x384xf32>
    %6 = vector.extract_strided_slice %5 {offsets = [0, 0], sizes = [512, 128], strides = [1, 1]} : vector<512x384xf32> to vector<512x128xf32>
    %7 = arith.truncf %6 : vector<512x128xf32> to vector<512x128xbf16>
    %c0_5 = arith.constant 0 : index
    %c0_6 = arith.constant 0 : index
    %8 = vector.load %arg4[%c0_5, %c0_6] : memref<512x128xbf16, #tpu.memory_space<vmem>>, vector<512x128xbf16>
    tpu.vector_store %arg4[%c0_5, %c0_6], %7 {strides = array<i32>} : memref<512x128xbf16, #tpu.memory_space<vmem>>, vector<512x128xbf16>,
    %9 = vector.extract_strided_slice %5 {offsets = [0, 128], sizes = [512, 128], strides = [1, 1]} : vector<512x384xf32> to vector<512x128xf32>
    %10 = arith.truncf %9 : vector<512x128xf32> to vector<512x128xbf16>
    %c0_7 = arith.constant 0 : index
    %c0_8 = arith.constant 0 : index
    %11 = vector.load %arg5[%c0_7, %c0_8] : memref<512x128xbf16, #tpu.memory_space<vmem>>, vector<512x128xbf16>
    tpu.vector_store %arg5[%c0_7, %c0_8], %10 {strides = array<i32>} : memref<512x128xbf16, #tpu.memory_space<vmem>>, vector<512x128xbf16>,
    %12 = vector.extract_strided_slice %5 {offsets = [0, 256], sizes = [512, 128], strides = [1, 1]} : vector<512x384xf32> to vector<512x128xf32>
    %13 = arith.truncf %12 : vector<512x128xf32> to vector<512x128xbf16>
    %c0_9 = arith.constant 0 : index
    %c0_10 = arith.constant 0 : index
    %14 = vector.load %arg6[%c0_9, %c0_10] : memref<512x128xbf16, #tpu.memory_space<vmem>>, vector<512x128xbf16>
    tpu.vector_store %arg6[%c0_9, %c0_10], %13 {strides = array<i32>} : memref<512x128xbf16, #tpu.memory_space<vmem>>, vector<512x128xbf16>,
    return
  }
  func.func @transform_0(%arg0: i32) -> (i32, i32) {
    %c0_i32 = arith.constant 0 : i32
    %c0_i32_0 = arith.constant 0 : i32
    return %arg0, %c0_i32 : i32, i32
  }
  func.func @transform_1(%arg0: i32) -> (i32, i32) {
    %c0_i32 = arith.constant 0 : i32
    %c0_i32_0 = arith.constant 0 : i32
    %c0_i32_1 = arith.constant 0 : i32
    return %c0_i32, %c0_i32_0 : i32, i32
  }
  func.func @transform_2(%arg0: i32) -> (i32, i32) {
    %c0_i32 = arith.constant 0 : i32
    %c0_i32_0 = arith.constant 0 : i32
    %c0_i32_1 = arith.constant 0 : i32
    return %c0_i32, %c0_i32_0 : i32, i32
  }
  func.func @transform_3(%arg0: i32) -> (i32, i32) {
    %c0_i32 = arith.constant 0 : i32
    %c0_i32_0 = arith.constant 0 : i32
    return %arg0, %c0_i32 : i32, i32
  }
  func.func @transform_4(%arg0: i32) -> (i32, i32) {
    %c0_i32 = arith.constant 0 : i32
    %c0_i32_0 = arith.constant 0 : i32
    return %arg0, %c0_i32 : i32, i32
  }
  func.func @transform_5(%arg0: i32) -> (i32, i32) {
    %c0_i32 = arith.constant 0 : i32
    %c0_i32_0 = arith.constant 0 : i32
    return %arg0, %c0_i32 : i32, i32
  }
}

</mosaic_0001>

<llo_original>
// kernel: tpu_custom_call.1
$region0: #{tpu_custom_call.1}
  #allocation0 [shape = 'u32[]', space=smem, size = 0x4, offset = 0x4, fixed_abs, tag = 'smem constant byte address 0x4 - core index']
  #allocation1 [shape = 'u32[144,128]{1,0:T(1,128)}', space=vmem, size = 0x12000, scoped, tag = 'internal scratch']
  %s0 = inlined_call_operand.hbm [shape: bf16[1024,128], index: 0, kind: input, shape index: {}]
  %s1 = inlined_call_operand.hbm [shape: bf16[128,384], index: 1, kind: input, shape index: {}]
  %s2 = inlined_call_operand.vmem [shape: f32[1,384], index: 2, kind: input, shape index: {}]
  %s3 = inlined_call_operand.hbm [shape: bf16[1024,128], index: 3, kind: output, shape index: {0}]
  %s4 = inlined_call_operand.hbm [shape: bf16[1024,128], index: 4, kind: output, shape index: {1}]
  %s5 = inlined_call_operand.hbm [shape: bf16[1024,128], index: 5, kind: output, shape index: {2}]
  %6 = xla_tuple %s3, %s4, %s5
  %s7 = sld [smem:[#allocation0]]
  $region69: #{tpu_custom_call.1} parent=0
    _
  %s9 = ssub.s32 1, %s7
  %s10 = scalar_select 0, %s9, %s7
  $region1: #{tpu_custom_call.1} parent=0
    #allocation2 [shape = 'u8[262144]{0}', space=vmem, size = 0x40000, scoped, tag = 'input window, operand 0']
    #allocation3 [shape = 's32[2]{0}', space=sflag, size = 0x8, scoped, tag = 'scoped memory for tpu_custom_call.1']
    #allocation4 [shape = 's32[2]{0}', space=sflag, size = 0x8, scoped, tag = 'scoped memory for tpu_custom_call.1']
    #allocation5 [shape = 'u8[98304]{0}', space=vmem, size = 0x18000, scoped, tag = 'input window, operand 1, single buffered']
    #allocation6 [shape = 's32[1]{0}', space=sflag, size = 0x4, scoped, tag = 'scoped memory for tpu_custom_call.1']
    #allocation7 [shape = 'u8[262144]{0}', space=vmem, size = 0x40000, scoped, tag = 'output window, operand 0']
    #allocation8 [shape = 'u8[262144]{0}', space=vmem, size = 0x40000, scoped, tag = 'output window, operand 1']
    #allocation9 [shape = 's32[2]{0}', space=sflag, size = 0x8, scoped, tag = 'scoped memory for tpu_custom_call.1']
    #allocation10 [shape = 'u8[262144]{0}', space=vmem, size = 0x40000, scoped, tag = 'output window, operand 2']
    %11 = vsyncpa [#allocation3], 0
    %s12 = scalar_lea.sflag [#allocation3], 1
    %13 = vsyncpa %s12, 0
    %14 = vsyncpa [#allocation6], 0
    %15 = vsyncpa [#allocation4], 0
    %s16 = scalar_lea.sflag [#allocation4], 1
    %17 = vsyncpa %s16, 0
    %18 = vsyncpa [#allocation9], 0
    %s19 = scalar_lea.sflag [#allocation9], 1
    %20 = vsyncpa %s19, 0
    loop: start=0, step=1, limit=4
    $region2: #{tpu_custom_call.1} parent=1 // loop_pre_header
      _
    $region3: #{tpu_custom_call.1} parent=1 // loop_header
      %s22 = sphi 0, %s26
      %p23 = scmp.ge.s32.totalorder %s22, 4
      %s32 = sphi 0, %s34
      %s35 = sphi 0, %s32
      %s36 = sphi 0, %s35
      %s52 = sphi 0, %s36
      %s56 = sphi 0, %s56
      %s58 = sphi 0, %s56
      %s59 = sphi 0, %s58
      %s73 = sphi 0, %s59
      %s77 = sphi 0, %s77
      %s79 = sphi 0, %s77
      %s80 = sphi 0, %s79
      %s94 = sphi 0, %s80
      %s100 = sphi 0, %s102
      %s103 = sphi 0, %s100
      %s104 = sphi 0, %s103
      %s120 = sphi 0, %s104
      %s126 = sphi 0, %s128
      %s129 = sphi 0, %s126
      %s130 = sphi 0, %s129
      %s146 = sphi 0, %s130
      %s152 = sphi 0, %s154
      %s155 = sphi 0, %s152
      %s156 = sphi 0, %s155
      %s172 = sphi 0, %s156
    $region4: #{tpu_custom_call.1} parent=1 // loop_header_branch
      %25 = sbr.rel (%p23) target = $region8
    $region5: #{tpu_custom_call.1} parent=1 // loop_body
      %s27 = ssub.s32 %s22, 1
      %s28 = ssub.s32 %s22, 2
      %s29 = sadd.s32 %s22, 1
      %s30 = ssub.s32 %s22, %s29
      %p31 = scmp.eq.s32.totalorder %s30, 0
      %s33 = sadd.s32 %s32, 1
      %s34 = scalar_select %p31, %s32, %s33
      %p37 = pneg %p31
      %p38 = scmp.eq.s32.totalorder %s22, 1
      %p39 = por %p37, %p38
      %p40 = scmp.ne.s32.totalorder %s32, %s35
      %p41 = scmp.eq.s32.totalorder %s22, 0
      %p42 = por %p40, %p41
      %p43 = scmp.ne.s32.totalorder %s32, %s35
      %p44 = scmp.eq.s32.totalorder %s27, 1
      %p45 = por %p43, %p44
      %p46 = scmp.ne.s32.totalorder %s35, %s36
      %p47 = scmp.eq.s32.totalorder %s27, 0
      %p48 = por %p46, %p47
      %p49 = scmp.ne.s32.totalorder %s35, %s36
      %p50 = scmp.eq.s32.totalorder %s28, 1
      %p51 = por %p49, %p50
      %p53 = scmp.ne.s32.totalorder %s36, %s52
      %p54 = scmp.eq.s32.totalorder %s28, 0
      %p55 = por %p53, %p54
      %s57 = sadd.s32 %s56, 1
      %p60 = scmp.eq.s32.totalorder %s22, 1
      %p61 = scmp.ne.s32.totalorder %s56, %s58
      %p62 = scmp.eq.s32.totalorder %s22, 0
      %p63 = por %p61, %p62
      %p64 = scmp.ne.s32.totalorder %s56, %s58
      %p65 = scmp.eq.s32.totalorder %s27, 1
      %p66 = por %p64, %p65
      %p67 = scmp.ne.s32.totalorder %s58, %s59
      %p68 = scmp.eq.s32.totalorder %s27, 0
      %p69 = por %p67, %p68
      %p70 = scmp.ne.s32.totalorder %s58, %s59
      %p71 = scmp.eq.s32.totalorder %s28, 1
      %p72 = por %p70, %p71
      %p74 = scmp.ne.s32.totalorder %s59, %s73
      %p75 = scmp.eq.s32.totalorder %s28, 0
      %p76 = por %p74, %p75
      %s78 = sadd.s32 %s77, 1
      %p81 = scmp.eq.s32.totalorder %s22, 1
      %p82 = scmp.ne.s32.totalorder %s77, %s79
      %p83 = scmp.eq.s32.totalorder %s22, 0
      %p84 = por %p82, %p83
      %p85 = scmp.ne.s32.totalorder %s77, %s79
      %p86 = scmp.eq.s32.totalorder %s27, 1
      %p87 = por %p85, %p86
      %p88 = scmp.ne.s32.totalorder %s79, %s80
      %p89 = scmp.eq.s32.totalorder %s27, 0
      %p90 = por %p88, %p89
      %p91 = scmp.ne.s32.totalorder %s79, %s80
      %p92 = scmp.eq.s32.totalorder %s28, 1
      %p93 = por %p91, %p92
      %p95 = scmp.ne.s32.totalorder %s80, %s94
      %p96 = scmp.eq.s32.totalorder %s28, 0
      %p97 = por %p95, %p96
      %s98 = ssub.s32 %s22, %s29
      %p99 = scmp.eq.s32.totalorder %s98, 0
      %s101 = sadd.s32 %s100, 1
      %s102 = scalar_select %p99, %s100, %s101
      %p105 = pneg %p99
      %p106 = scmp.eq.s32.totalorder %s22, 1
      %p107 = por %p105, %p106
      %p108 = scmp.ne.s32.totalorder %s100, %s103
      %p109 = scmp.eq.s32.totalorder %s22, 0
      %p110 = por %p108, %p109
      %p111 = scmp.ne.s32.totalorder %s100, %s103
      %p112 = scmp.eq.s32.totalorder %s27, 1
      %p113 = por %p111, %p112
      %p114 = scmp.ne.s32.totalorder %s103, %s104
      %p115 = scmp.eq.s32.totalorder %s27, 0
      %p116 = por %p114, %p115
      %p117 = scmp.ne.s32.totalorder %s103, %s104
      %p118 = scmp.eq.s32.totalorder %s28, 1
      %p119 = por %p117, %p118
      %p121 = scmp.ne.s32.totalorder %s104, %s120
      %p122 = scmp.eq.s32.totalorder %s28, 0
      %p123 = por %p121, %p122
      %s124 = ssub.s32 %s22, %s29
      %p125 = scmp.eq.s32.totalorder %s124, 0
      %s127 = sadd.s32 %s126, 1
      %s128 = scalar_select %p125, %s126, %s127
      %p131 = pneg %p125
      %p132 = scmp.eq.s32.totalorder %s22, 1
      %p133 = por %p131, %p132
      %p134 = scmp.ne.s32.totalorder %s126, %s129
      %p135 = scmp.eq.s32.totalorder %s22, 0
      %p136 = por %p134, %p135
      %p137 = scmp.ne.s32.totalorder %s126, %s129
      %p138 = scmp.eq.s32.totalorder %s27, 1
      %p139 = por %p137, %p138
      %p140 = scmp.ne.s32.totalorder %s129, %s130
      %p141 = scmp.eq.s32.totalorder %s27, 0
      %p142 = por %p140, %p141
      %p143 = scmp.ne.s32.totalorder %s129, %s130
      %p144 = scmp.eq.s32.totalorder %s28, 1
      %p145 = por %p143, %p144
      %p147 = scmp.ne.s32.totalorder %s130, %s146
      %p148 = scmp.eq.s32.totalorder %s28, 0
      %p149 = por %p147, %p148
      %s150 = ssub.s32 %s22, %s29
      %p151 = scmp.eq.s32.totalorder %s150, 0
      %s153 = sadd.s32 %s152, 1
      %s154 = scalar_select %p151, %s152, %s153
      %p157 = pneg %p151
      %p158 = scmp.eq.s32.totalorder %s22, 1
      %p159 = por %p157, %p158
      %p160 = scmp.ne.s32.totalorder %s152, %s155
      %p161 = scmp.eq.s32.totalorder %s22, 0
      %p162 = por %p160, %p161
      %p163 = scmp.ne.s32.totalorder %s152, %s155
      %p164 = scmp.eq.s32.totalorder %s27, 1
      %p165 = por %p163, %p164
      %p166 = scmp.ne.s32.totalorder %s155, %s156
      %p167 = scmp.eq.s32.totalorder %s27, 0
      %p168 = por %p166, %p167
      %p169 = scmp.ne.s32.totalorder %s155, %s156
      %p170 = scmp.eq.s32.totalorder %s28, 1
      %p171 = por %p169, %p170
      %p173 = scmp.ne.s32.totalorder %s156, %s172
      %p174 = scmp.eq.s32.totalorder %s28, 0
      %p175 = por %p173, %p174
      %p176 = scmp.le.s32.totalorder 1, %s22
      %p177 = scmp.lt.s32.totalorder %s22, 3
      %p178 = pnand %p176, %p177
      %p179 = pneg %p178
      // Predicated region
      $region9: #{tpu_custom_call.1} parent=5 // pred_check
        _
      $region10: #{tpu_custom_call.1} parent=5 // pred_check_branch
        %181 = sbr.rel (%p178) target = $region12
      $region11: #{tpu_custom_call.1} parent=5 // pred_region
        %s182 = ssub.s32 %s22, 1
        // Predicated region
        $region13: #{tpu_custom_call.1} parent=11 // pred_check
          %p183 = pneg %p69
        $region14: #{tpu_custom_call.1} parent=11 // pred_check_branch
          %185 = sbr.rel (%p183) target = $region16
        $region15: #{tpu_custom_call.1} parent=11 // pred_region
          %s187 = ssub.s32 3072, 3072
          %188 = vsyncadd [#allocation6], %s187
          %s189 = sshll.u32 [#allocation5], 4
          %s190 = int_to_ptr.vmem [resolvable:$true] %s189
          %195 = dma.hbm_to_vmem [thread:$0]  %s1, 3072, %s190, [#allocation6], 192, 192, 12
        $region16: #{tpu_custom_call.1} parent=11 // pred_fallthru
          _
        // Predicated region
        $region17: #{tpu_custom_call.1} parent=11 // pred_check
          %p196 = pneg %p90
        $region18: #{tpu_custom_call.1} parent=11 // pred_check_branch
          %198 = sbr.rel (%p196) target = $region20
        $region19: #{tpu_custom_call.1} parent=11 // pred_region
          _
        $region20: #{tpu_custom_call.1} parent=11 // pred_fallthru
          _
      $region12: #{tpu_custom_call.1} parent=5 // pred_fallthru
        _
      %p199 = scmp.lt.s32.totalorder %s22, 2
      // Predicated region
      $region21: #{tpu_custom_call.1} parent=5 // pred_check
        %p200 = pneg %p199
      $region22: #{tpu_custom_call.1} parent=5 // pred_check_branch
        %202 = sbr.rel (%p200) target = $region24
      $region23: #{tpu_custom_call.1} parent=5 // pred_region
        // Predicated region
        $region25: #{tpu_custom_call.1} parent=23 // pred_check
          %p203 = pneg %p42
        $region26: #{tpu_custom_call.1} parent=23 // pred_check_branch
          %205 = sbr.rel (%p203) target = $region28
        $region27: #{tpu_custom_call.1} parent=23 // pred_region
          %s206 = sand.u32 %s32, 1
          %s207 = scalar_lea.sflag [#allocation3], %s206
          %s208 = sand.u32 %s32, 1
          %s209 = smul.addr %s208, 256
          %s210 = scalar_lea.vmem [#allocation2], %s209
          %s211 = smul.u32 64, %s22
          %s213 = ssub.s32 4096, 4096
          %214 = vsyncadd %s207, %s213
          %s215 = smul.addr %s211, 64
          %s216 = scalar_lea.hbm %s0, %s215
          %s217 = sshll.u32 %s210, 4
          %s218 = int_to_ptr.vmem [resolvable:$true] %s217
          %223 = dma.hbm_to_vmem [thread:$0]  %s216, 4096, %s218, %s207, 64, 64, 4
        $region28: #{tpu_custom_call.1} parent=23 // pred_fallthru
          _
      $region24: #{tpu_custom_call.1} parent=5 // pred_fallthru
        _
      %p224 = scmp.le.s32.totalorder 1, %s22
      %p225 = scmp.lt.s32.totalorder %s22, 3
      %p226 = pnand %p224, %p225
      %p227 = pneg %p226
      // Predicated region
      $region29: #{tpu_custom_call.1} parent=5 // pred_check
        _
      $region30: #{tpu_custom_call.1} parent=5 // pred_check_branch
        %229 = sbr.rel (%p226) target = $region32
      $region31: #{tpu_custom_call.1} parent=5 // pred_region
        %s230 = ssub.s32 %s22, 1
        %s231 = sand.u32 %s35, 1
        %s232 = scalar_lea.sflag [#allocation3], %s231
        %s233 = sand.u32 %s35, 1
        %s234 = smul.addr %s233, 256
        %s235 = scalar_lea.vmem [#allocation2], %s234
        // Predicated region
        $region33: #{tpu_custom_call.1} parent=31 // pred_check
          %p236 = pneg %p48
        $region34: #{tpu_custom_call.1} parent=31 // pred_check_branch
          %238 = sbr.rel (%p236) target = $region36
        $region35: #{tpu_custom_call.1} parent=31 // pred_region
          %239 = dma.done %s232, 4096
        $region36: #{tpu_custom_call.1} parent=31 // pred_fallthru
          _
        // Predicated region
        $region37: #{tpu_custom_call.1} parent=31 // pred_check
          %p240 = pneg %p69
        $region38: #{tpu_custom_call.1} parent=31 // pred_check_branch
          %242 = sbr.rel (%p240) target = $region40
        $region39: #{tpu_custom_call.1} parent=31 // pred_region
          %243 = dma.done [#allocation6], 3072
        $region40: #{tpu_custom_call.1} parent=31 // pred_fallthru
          _
        %s244 = sand.u32 %s35, 1
        %s245 = scalar_lea.sflag [#allocation3], %s244
        %s246 = sand.u32 %s35, 1
        %s247 = smul.addr %s246, 256
        %s248 = scalar_lea.vmem [#allocation2], %s247
        %p249 = pneg %p48
        %p250 = pneg %p45
        %p251 = pneg %p69
        %p252 = pneg %p66
        %p253 = pneg %p90
        %p254 = pneg %p87
        %p255 = pneg %p116
        %p256 = pneg %p113
        %s257 = sand.u32 %s103, 1
        %s258 = scalar_lea.sflag [#allocation4], %s257
        %s259 = sand.u32 %s103, 1
        %s260 = smul.addr %s259, 256
        %s261 = scalar_lea.vmem [#allocation7], %s260
        %p262 = pneg %p142
        %p263 = pneg %p139
        %s264 = sand.u32 %s27, 1
        %s265 = scalar_lea.sflag [#allocation9], %s264
        %s266 = sand.u32 %s129, 1
        %s267 = smul.addr %s266, 256
        %s268 = scalar_lea.vmem [#allocation8], %s267
        %p269 = pneg %p168
        %p270 = pneg %p165
        %s271 = sand.u32 %s27, 1
        %s272 = scalar_lea.sflag [#allocation9], %s271
        %s273 = sand.u32 %s155, 1
        %s274 = smul.addr %s273, 256
        %s275 = scalar_lea.vmem [#allocation10], %s274
        %s276 = smul.u32 64, %s27
        %s277 = smul.u32 64, %s27
        %s278 = smul.u32 64, %s27
        %s279 = smul.u32 64, %s27
        %v281 = vld [vmem:[%s235] sm:$0xf]
        %v282 = vld [vmem:[%s235 + $0x4] sm:$0xf]
        %v283 = vld [vmem:[%s235 + $0x8] sm:$0xf]
        %v284 = vld [vmem:[%s235 + $0xc] sm:$0xf]
        %v285 = vld [vmem:[%s235 + $0x10] sm:$0xf]
        %v286 = vld [vmem:[%s235 + $0x14] sm:$0xf]
        %v287 = vld [vmem:[%s235 + $0x18] sm:$0xf]
        %v288 = vld [vmem:[%s235 + $0x1c] sm:$0xf]
        %v289 = vld [vmem:[%s235 + $0x20] sm:$0xf]
        %v290 = vld [vmem:[%s235 + $0x24] sm:$0xf]
        %v291 = vld [vmem:[%s235 + $0x28] sm:$0xf]
        %v292 = vld [vmem:[%s235 + $0x2c] sm:$0xf]
        %v293 = vld [vmem:[%s235 + $0x30] sm:$0xf]
        %v294 = vld [vmem:[%s235 + $0x34] sm:$0xf]
        %v295 = vld [vmem:[%s235 + $0x38] sm:$0xf]
        %v296 = vld [vmem:[%s235 + $0x3c] sm:$0xf]
        %v297 = vld [vmem:[%s235 + $0x40] sm:$0xf]
        %v298 = vld [vmem:[%s235 + $0x44] sm:$0xf]
        %v299 = vld [vmem:[%s235 + $0x48] sm:$0xf]
        %v300 = vld [vmem:[%s235 + $0x4c] sm:$0xf]
        %v301 = vld [vmem:[%s235 + $0x50] sm:$0xf]
        %v302 = vld [vmem:[%s235 + $0x54] sm:$0xf]
        %v303 = vld [vmem:[%s235 + $0x58] sm:$0xf]
        %v304 = vld [vmem:[%s235 + $0x5c] sm:$0xf]
        %v305 = vld [vmem:[%s235 + $0x60] sm:$0xf]
        %v306 = vld [vmem:[%s235 + $0x64] sm:$0xf]
        %v307 = vld [vmem:[%s235 + $0x68] sm:$0xf]
        %v308 = vld [vmem:[%s235 + $0x6c] sm:$0xf]
        %v309 = vld [vmem:[%s235 + $0x70] sm:$0xf]
        %v310 = vld [vmem:[%s235 + $0x74] sm:$0xf]
        %v311 = vld [vmem:[%s235 + $0x78] sm:$0xf]
        %v312 = vld [vmem:[%s235 + $0x7c] sm:$0xf]
        %v313 = vld [vmem:[%s235 + $0x80] sm:$0xf]
        %v314 = vld [vmem:[%s235 + $0x84] sm:$0xf]
        %v315 = vld [vmem:[%s235 + $0x88] sm:$0xf]
        %v316 = vld [vmem:[%s235 + $0x8c] sm:$0xf]
        %v317 = vld [vmem:[%s235 + $0x90] sm:$0xf]
        %v318 = vld [vmem:[%s235 + $0x94] sm:$0xf]
        %v319 = vld [vmem:[%s235 + $0x98] sm:$0xf]
        %v320 = vld [vmem:[%s235 + $0x9c] sm:$0xf]
        %v321 = vld [vmem:[%s235 + $0xa0] sm:$0xf]
        %v322 = vld [vmem:[%s235 + $0xa4] sm:$0xf]
        %v323 = vld [vmem:[%s235 + $0xa8] sm:$0xf]
        %v324 = vld [vmem:[%s235 + $0xac] sm:$0xf]
        %v325 = vld [vmem:[%s235 + $0xb0] sm:$0xf]
        %v326 = vld [vmem:[%s235 + $0xb4] sm:$0xf]
        %v327 = vld [vmem:[%s235 + $0xb8] sm:$0xf]
        %v328 = vld [vmem:[%s235 + $0xbc] sm:$0xf]
        %v329 = vld [vmem:[%s235 + $0xc0] sm:$0xf]
        %v330 = vld [vmem:[%s235 + $0xc4] sm:$0xf]
        %v331 = vld [vmem:[%s235 + $0xc8] sm:$0xf]
        %v332 = vld [vmem:[%s235 + $0xcc] sm:$0xf]
        %v333 = vld [vmem:[%s235 + $0xd0] sm:$0xf]
        %v334 = vld [vmem:[%s235 + $0xd4] sm:$0xf]
        %v335 = vld [vmem:[%s235 + $0xd8] sm:$0xf]
        %v336 = vld [vmem:[%s235 + $0xdc] sm:$0xf]
        %v337 = vld [vmem:[%s235 + $0xe0] sm:$0xf]
        %v338 = vld [vmem:[%s235 + $0xe4] sm:$0xf]
        %v339 = vld [vmem:[%s235 + $0xe8] sm:$0xf]
        %v340 = vld [vmem:[%s235 + $0xec] sm:$0xf]
        %v341 = vld [vmem:[%s235 + $0xf0] sm:$0xf]
        %v342 = vld [vmem:[%s235 + $0xf4] sm:$0xf]
        %v343 = vld [vmem:[%s235 + $0xf8] sm:$0xf]
        %v344 = vld [vmem:[%s235 + $0xfc] sm:$0xf]
        %v345 = vld [vmem:[#allocation5] sm:$0xff]
        %v346 = vld [vmem:[#allocation5 + $0x8] sm:$0xf]
        %v347 = vld [vmem:[#allocation5 + $0xc] sm:$0xff]
        %v348 = vld [vmem:[#allocation5 + $0x14] sm:$0xf]
        %v349 = vld [vmem:[#allocation5 + $0x18] sm:$0xff]
        %v350 = vld [vmem:[#allocation5 + $0x20] sm:$0xf]
        %v351 = vld [vmem:[#allocation5 + $0x24] sm:$0xff]
        %v352 = vld [vmem:[#allocation5 + $0x2c] sm:$0xf]
        %v353 = vld [vmem:[#allocation5 + $0x30] sm:$0xff]
        %v354 = vld [vmem:[#allocation5 + $0x38] sm:$0xf]
        %v355 = vld [vmem:[#allocation5 + $0x3c] sm:$0xff]
        %v356 = vld [vmem:[#allocation5 + $0x44] sm:$0xf]
        %v357 = vld [vmem:[#allocation5 + $0x48] sm:$0xff]
        %v358 = vld [vmem:[#allocation5 + $0x50] sm:$0xf]
        %v359 = vld [vmem:[#allocation5 + $0x54] sm:$0xff]
        %v360 = vld [vmem:[#allocation5 + $0x5c] sm:$0xf]
        %v361 = vld [vmem:[#allocation5 + $0x60] sm:$0xff]
        %v362 = vld [vmem:[#allocation5 + $0x68] sm:$0xf]
        %v363 = vld [vmem:[#allocation5 + $0x6c] sm:$0xff]
        %v364 = vld [vmem:[#allocation5 + $0x74] sm:$0xf]
        %v365 = vld [vmem:[#allocation5 + $0x78] sm:$0xff]
        %v366 = vld [vmem:[#allocation5 + $0x80] sm:$0xf]
        %v367 = vld [vmem:[#allocation5 + $0x84] sm:$0xff]
        %v368 = vld [vmem:[#allocation5 + $0x8c] sm:$0xf]
        %v369 = vld [vmem:[#allocation5 + $0x90] sm:$0xff]
        %v370 = vld [vmem:[#allocation5 + $0x98] sm:$0xf]
        %v371 = vld [vmem:[#allocation5 + $0x9c] sm:$0xff]
        %v372 = vld [vmem:[#allocation5 + $0xa4] sm:$0xf]
        %v373 = vld [vmem:[#allocation5 + $0xa8] sm:$0xff]
        %v374 = vld [vmem:[#allocation5 + $0xb0] sm:$0xf]
        %v375 = vld [vmem:[#allocation5 + $0xb4] sm:$0xff]
        %v376 = vld [vmem:[#allocation5 + $0xbc] sm:$0xf]
        %v377 = vld [vmem:[%s2] sm:$0x7]
        %v379 = vlaneseq
        %v380 = vshrl.u32 %v379, 7
        %v381 = vsub.s32 0, %v380
        %v382 = vrot.slane %v377, %v381
        %v383 = vlaneseq
        %v384 = vshrl.u32 %v383, 7
        %v385 = vsub.s32 1, %v384
        %v386 = vrot.slane %v377, %v385
        %v387 = vlaneseq
        %v388 = vshrl.u32 %v387, 7
        %v389 = vsub.s32 2, %v388
        %v390 = vrot.slane %v377, %v389
        %v458 = vunpack.c.l.b16 %v281
        %v459 = vunpack.c.l.b16 %v282
        %v460 = vunpack.c.l.b16 %v283
        %v461 = vunpack.c.l.b16 %v284
        %v462 = vunpack.c.l.b16 %v285
        %v463 = vunpack.c.l.b16 %v286
        %v464 = vunpack.c.l.b16 %v287
        %v465 = vunpack.c.l.b16 %v288
        %v466 = vunpack.c.l.b16 %v289
        %v467 = vunpack.c.l.b16 %v290
        %v468 = vunpack.c.l.b16 %v291
        %v469 = vunpack.c.l.b16 %v292
        %v470 = vunpack.c.l.b16 %v293
        %v471 = vunpack.c.l.b16 %v294
        %v472 = vunpack.c.l.b16 %v295
        %v473 = vunpack.c.l.b16 %v296
        %v474 = vunpack.c.l.b16 %v297
        %v475 = vunpack.c.l.b16 %v298
        %v476 = vunpack.c.l.b16 %v299
        %v477 = vunpack.c.l.b16 %v300
        %v478 = vunpack.c.l.b16 %v301
        %v479 = vunpack.c.l.b16 %v302
        %v480 = vunpack.c.l.b16 %v303
        %v481 = vunpack.c.l.b16 %v304
        %v482 = vunpack.c.l.b16 %v305
        %v483 = vunpack.c.l.b16 %v306
        %v484 = vunpack.c.l.b16 %v307
        %v485 = vunpack.c.l.b16 %v308
        %v486 = vunpack.c.l.b16 %v309
        %v487 = vunpack.c.l.b16 %v310
        %v488 = vunpack.c.l.b16 %v311
        %v489 = vunpack.c.l.b16 %v312
        %v490 = vunpack.c.l.b16 %v313
        %v491 = vunpack.c.l.b16 %v314
        %v492 = vunpack.c.l.b16 %v315
        %v493 = vunpack.c.l.b16 %v316
        %v494 = vunpack.c.l.b16 %v317
        %v495 = vunpack.c.l.b16 %v318
        %v496 = vunpack.c.l.b16 %v319
        %v497 = vunpack.c.l.b16 %v320
        %v498 = vunpack.c.l.b16 %v321
        %v499 = vunpack.c.l.b16 %v322
        %v500 = vunpack.c.l.b16 %v323
        %v501 = vunpack.c.l.b16 %v324
        %v502 = vunpack.c.l.b16 %v325
        %v503 = vunpack.c.l.b16 %v326
        %v504 = vunpack.c.l.b16 %v327
        %v505 = vunpack.c.l.b16 %v328
        %v506 = vunpack.c.l.b16 %v329
        %v507 = vunpack.c.l.b16 %v330
        %v508 = vunpack.c.l.b16 %v331
        %v509 = vunpack.c.l.b16 %v332
        %v510 = vunpack.c.l.b16 %v333
        %v511 = vunpack.c.l.b16 %v334
        %v512 = vunpack.c.l.b16 %v335
        %v513 = vunpack.c.l.b16 %v336
        %v514 = vunpack.c.l.b16 %v337
        %v515 = vunpack.c.l.b16 %v338
        %v516 = vunpack.c.l.b16 %v339
        %v517 = vunpack.c.l.b16 %v340
        %v518 = vunpack.c.l.b16 %v341
        %v519 = vunpack.c.l.b16 %v342
        %v520 = vunpack.c.l.b16 %v343
        %v521 = vunpack.c.l.b16 %v344
        %v522 = vpack.c.b16 %v459, %v458
        %v523 = vpack.c.b16 %v461, %v460
        %v524 = vpack.c.b16 %v463, %v462
        %v525 = vpack.c.b16 %v465, %v464
        %v526 = vpack.c.b16 %v467, %v466
        %v527 = vpack.c.b16 %v469, %v468
        %v528 = vpack.c.b16 %v471, %v470
        %v529 = vpack.c.b16 %v473, %v472
        %v530 = vpack.c.b16 %v475, %v474
        %v531 = vpack.c.b16 %v477, %v476
        %v532 = vpack.c.b16 %v479, %v478
        %v533 = vpack.c.b16 %v481, %v480
        %v534 = vpack.c.b16 %v483, %v482
        %v535 = vpack.c.b16 %v485, %v484
        %v536 = vpack.c.b16 %v487, %v486
        %v537 = vpack.c.b16 %v489, %v488
        %v538 = vpack.c.b16 %v491, %v490
        %v539 = vpack.c.b16 %v493, %v492
        %v540 = vpack.c.b16 %v495, %v494
        %v541 = vpack.c.b16 %v497, %v496
        %v542 = vpack.c.b16 %v499, %v498
        %v543 = vpack.c.b16 %v501, %v500
        %v544 = vpack.c.b16 %v503, %v502
        %v545 = vpack.c.b16 %v505, %v504
        %v546 = vpack.c.b16 %v507, %v506
        %v547 = vpack.c.b16 %v509, %v508
        %v548 = vpack.c.b16 %v511, %v510
        %v549 = vpack.c.b16 %v513, %v512
        %v550 = vpack.c.b16 %v515, %v514
        %v551 = vpack.c.b16 %v517, %v516
        %v552 = vpack.c.b16 %v519, %v518
        %v553 = vpack.c.b16 %v521, %v520
        %v618 = vunpack.c.l.b16 %v345
        %v619 = vunpack.c.h.b16 %v345
        %v620 = vunpack.c.l.b16 %v346
        %v621 = vunpack.c.l.b16 %v347
        %v622 = vunpack.c.h.b16 %v347
        %v623 = vunpack.c.l.b16 %v348
        %v624 = vunpack.c.l.b16 %v349
        %v625 = vunpack.c.h.b16 %v349
        %v626 = vunpack.c.l.b16 %v350
        %v627 = vunpack.c.l.b16 %v351
        %v628 = vunpack.c.h.b16 %v351
        %v629 = vunpack.c.l.b16 %v352
        %v630 = vunpack.c.l.b16 %v353
        %v631 = vunpack.c.h.b16 %v353
        %v632 = vunpack.c.l.b16 %v354
        %v633 = vunpack.c.l.b16 %v355
        %v634 = vunpack.c.h.b16 %v355
        %v635 = vunpack.c.l.b16 %v356
        %v636 = vunpack.c.l.b16 %v357
        %v637 = vunpack.c.h.b16 %v357
        %v638 = vunpack.c.l.b16 %v358
        %v639 = vunpack.c.l.b16 %v359
        %v640 = vunpack.c.h.b16 %v359
        %v641 = vunpack.c.l.b16 %v360
        %v642 = vunpack.c.l.b16 %v361
        %v643 = vunpack.c.h.b16 %v361
        %v644 = vunpack.c.l.b16 %v362
        %v645 = vunpack.c.l.b16 %v363
        %v646 = vunpack.c.h.b16 %v363
        %v647 = vunpack.c.l.b16 %v364
        %v648 = vunpack.c.l.b16 %v365
        %v649 = vunpack.c.h.b16 %v365
        %v650 = vunpack.c.l.b16 %v366
        %v651 = vunpack.c.l.b16 %v367
        %v652 = vunpack.c.h.b16 %v367
        %v653 = vunpack.c.l.b16 %v368
        %v654 = vunpack.c.l.b16 %v369
        %v655 = vunpack.c.h.b16 %v369
        %v656 = vunpack.c.l.b16 %v370
        %v657 = vunpack.c.l.b16 %v371
        %v658 = vunpack.c.h.b16 %v371
        %v659 = vunpack.c.l.b16 %v372
        %v660 = vunpack.c.l.b16 %v373
        %v661 = vunpack.c.h.b16 %v373
        %v662 = vunpack.c.l.b16 %v374
        %v663 = vunpack.c.l.b16 %v375
        %v664 = vunpack.c.h.b16 %v375
        %v665 = vunpack.c.l.b16 %v376
        %v666 = vpack.c.b16 %v621, %v618
        %v667 = vpack.c.b16 %v622, %v619
        %v668 = vpack.c.b16 %v623, %v620
        %v669 = vpack.c.b16 %v627, %v624
        %v670 = vpack.c.b16 %v628, %v625
        %v671 = vpack.c.b16 %v629, %v626
        %v672 = vpack.c.b16 %v633, %v630
        %v673 = vpack.c.b16 %v634, %v631
        %v674 = vpack.c.b16 %v635, %v632
        %v675 = vpack.c.b16 %v639, %v636
        %v676 = vpack.c.b16 %v640, %v637
        %v677 = vpack.c.b16 %v641, %v638
        %v678 = vpack.c.b16 %v645, %v642
        %v679 = vpack.c.b16 %v646, %v643
        %v680 = vpack.c.b16 %v647, %v644
        %v681 = vpack.c.b16 %v651, %v648
        %v682 = vpack.c.b16 %v652, %v649
        %v683 = vpack.c.b16 %v653, %v650
        %v684 = vpack.c.b16 %v657, %v654
        %v685 = vpack.c.b16 %v658, %v655
        %v686 = vpack.c.b16 %v659, %v656
        %v687 = vpack.c.b16 %v663, %v660
        %v688 = vpack.c.b16 %v664, %v661
        %v689 = vpack.c.b16 %v665, %v662
        %714 = vmatprep.subr.bf16.mxu0 %v688
        %715 = vmatpush1.bf16.msra.mxu0 %v687
        %716 = vmatprep.subr.bf16.mxu0 %v685
        %717 = vmatpush1.bf16.msra.mxu0 %v684
        %718 = vmatprep.subr.bf16.mxu0 %v682
        %719 = vmatpush1.bf16.msra.mxu0 %v681
        %720 = vmatprep.subr.bf16.mxu0 %v679
        %721 = vmatpush1.bf16.msra.mxu0 %v678
        %722 = vmatprep.subr.bf16.mxu0 %v676
        %723 = vmatpush1.bf16.msra.mxu0 %v675
        %724 = vmatprep.subr.bf16.mxu0 %v673
        %725 = vmatpush1.bf16.msra.mxu0 %v672
        %726 = vmatprep.subr.bf16.mxu0 %v670
        %727 = vmatpush1.bf16.msra.mxu0 %v669
        %728 = vmatprep.subr.bf16.mxu0 %v667
        %729 = vmatpush1.bf16.msra.mxu0 %v666
        %730 = vmatprep.subr.bf16.mxu0 0
        %731 = vmatpush2.bf16.msra.mxu0 0
        %732 = vmatprep.subr.bf16.mxu0 0
        %733 = vmatpush2.bf16.msra.mxu0 0
        %734 = vmatprep.subr.bf16.mxu0 0
        %735 = vmatpush2.bf16.msra.mxu0 0
        %736 = vmatprep.subr.bf16.mxu0 0
        %737 = vmatpush2.bf16.msra.mxu0 0
        %738 = vmatprep.subr.bf16.mxu0 0
        %739 = vmatpush2.bf16.msra.mxu0 0
        %740 = vmatprep.subr.bf16.mxu0 0
        %741 = vmatpush2.bf16.msra.mxu0 0
        %742 = vmatprep.subr.bf16.mxu0 0
        %743 = vmatpush2.bf16.msra.mxu0 0
        %744 = vmatprep.subr.bf16.mxu0 0
        %745 = vmatpush2.bf16.msra.mxu0 0
        %746 = vmatprep.mubr.bf16.mxu0 0
        %747 = vmatmul.mubr.bf16.gmra.mxu0 %v522
        %v748 = vpop.f32.mrf.mxu0
        %v749 = vadd.f32 %v382, %v748
        %v750 = vpop.f32.mrf.mxu0
        %v751 = vadd.f32 %v386, %v750
        %v752 = vpop.f32.mrf.mxu0
        %v753 = vadd.f32 %v382, %v752
        %v754 = vpop.f32.mrf.mxu0
        %v755 = vadd.f32 %v386, %v754
        %756 = vmatprep.mubr.bf16.mxu0 0
        %757 = vmatmul.mubr.bf16.gmra.mxu0 %v523
        %v758 = vpop.f32.mrf.mxu0
        %v759 = vadd.f32 %v382, %v758
        %v760 = vpop.f32.mrf.mxu0
        %v761 = vadd.f32 %v386, %v760
        %v762 = vpop.f32.mrf.mxu0
        %v763 = vadd.f32 %v382, %v762
        %v764 = vpop.f32.mrf.mxu0
        %v765 = vadd.f32 %v386, %v764
        %766 = vmatprep.mubr.bf16.mxu0 0
        %767 = vmatmul.mubr.bf16.gmra.mxu0 %v524
        %v768 = vpop.f32.mrf.mxu0
        %v769 = vadd.f32 %v382, %v768
        %v770 = vpop.f32.mrf.mxu0
        %v771 = vadd.f32 %v386, %v770
        %v772 = vpop.f32.mrf.mxu0
        %v773 = vadd.f32 %v382, %v772
        %v774 = vpop.f32.mrf.mxu0
        %v775 = vadd.f32 %v386, %v774
        %776 = vmatprep.mubr.bf16.mxu0 0
        %777 = vmatmul.mubr.bf16.gmra.mxu0 %v525
        %v778 = vpop.f32.mrf.mxu0
        %v779 = vadd.f32 %v382, %v778
        %v780 = vpop.f32.mrf.mxu0
        %v781 = vadd.f32 %v386, %v780
        %v782 = vpop.f32.mrf.mxu0
        %v783 = vadd.f32 %v382, %v782
        %v784 = vpop.f32.mrf.mxu0
        %v785 = vadd.f32 %v386, %v784
        %786 = vmatprep.mubr.bf16.mxu0 0
        %787 = vmatmul.mubr.bf16.gmra.mxu0 %v526
        %v788 = vpop.f32.mrf.mxu0
        %v789 = vadd.f32 %v382, %v788
        %v790 = vpop.f32.mrf.mxu0
        %v791 = vadd.f32 %v386, %v790
        %v792 = vpop.f32.mrf.mxu0
        %v793 = vadd.f32 %v382, %v792
        %v794 = vpop.f32.mrf.mxu0
        %v795 = vadd.f32 %v386, %v794
        %796 = vmatprep.mubr.bf16.mxu0 0
        %797 = vmatmul.mubr.bf16.gmra.mxu0 %v527
        %v798 = vpop.f32.mrf.mxu0
        %v799 = vadd.f32 %v382, %v798
        %v800 = vpop.f32.mrf.mxu0
        %v801 = vadd.f32 %v386, %v800
        %v802 = vpop.f32.mrf.mxu0
        %v803 = vadd.f32 %v382, %v802
        %v804 = vpop.f32.mrf.mxu0
        %v805 = vadd.f32 %v386, %v804
        %806 = vmatprep.mubr.bf16.mxu0 0
        %807 = vmatmul.mubr.bf16.gmra.mxu0 %v528
        %v808 = vpop.f32.mrf.mxu0
        %v809 = vadd.f32 %v382, %v808
        %v810 = vpop.f32.mrf.mxu0
        %v811 = vadd.f32 %v386, %v810
        %v812 = vpop.f32.mrf.mxu0
        %v813 = vadd.f32 %v382, %v812
        %v814 = vpop.f32.mrf.mxu0
        %v815 = vadd.f32 %v386, %v814
        %816 = vmatprep.mubr.bf16.mxu0 0
        %817 = vmatmul.mubr.bf16.gmra.mxu0 %v529
        %v818 = vpop.f32.mrf.mxu0
        %v819 = vadd.f32 %v382, %v818
        %v820 = vpop.f32.mrf.mxu0
        %v821 = vadd.f32 %v386, %v820
        %v822 = vpop.f32.mrf.mxu0
        %v823 = vadd.f32 %v382, %v822
        %v824 = vpop.f32.mrf.mxu0
        %v825 = vadd.f32 %v386, %v824
        %826 = vmatprep.mubr.bf16.mxu0 0
        %827 = vmatmul.mubr.bf16.gmra.mxu0 %v530
        %v828 = vpop.f32.mrf.mxu0
        %v829 = vadd.f32 %v382, %v828
        %v830 = vpop.f32.mrf.mxu0
        %v831 = vadd.f32 %v386, %v830
        %v832 = vpop.f32.mrf.mxu0
        %v833 = vadd.f32 %v382, %v832
        %v834 = vpop.f32.mrf.mxu0
        %v835 = vadd.f32 %v386, %v834
        %836 = vmatprep.mubr.bf16.mxu0 0
        %837 = vmatmul.mubr.bf16.gmra.mxu0 %v531
        %v838 = vpop.f32.mrf.mxu0
        %v839 = vadd.f32 %v382, %v838
        %v840 = vpop.f32.mrf.mxu0
        %v841 = vadd.f32 %v386, %v840
        %v842 = vpop.f32.mrf.mxu0
        %v843 = vadd.f32 %v382, %v842
        %v844 = vpop.f32.mrf.mxu0
        %v845 = vadd.f32 %v386, %v844
        %846 = vmatprep.mubr.bf16.mxu0 0
        %847 = vmatmul.mubr.bf16.gmra.mxu0 %v532
        %v848 = vpop.f32.mrf.mxu0
        %v849 = vadd.f32 %v382, %v848
        %v850 = vpop.f32.mrf.mxu0
        %v851 = vadd.f32 %v386, %v850
        %v852 = vpop.f32.mrf.mxu0
        %v853 = vadd.f32 %v382, %v852
        %v854 = vpop.f32.mrf.mxu0
        %v855 = vadd.f32 %v386, %v854
        %856 = vmatprep.mubr.bf16.mxu0 0
        %857 = vmatmul.mubr.bf16.gmra.mxu0 %v533
        %v858 = vpop.f32.mrf.mxu0
        %v859 = vadd.f32 %v382, %v858
        %v860 = vpop.f32.mrf.mxu0
        %v861 = vadd.f32 %v386, %v860
        %v862 = vpop.f32.mrf.mxu0
        %v863 = vadd.f32 %v382, %v862
        %v864 = vpop.f32.mrf.mxu0
        %v865 = vadd.f32 %v386, %v864
        %866 = vmatprep.mubr.bf16.mxu0 0
        %867 = vmatmul.mubr.bf16.gmra.mxu0 %v534
        %v868 = vpop.f32.mrf.mxu0
        %v869 = vadd.f32 %v382, %v868
        %v870 = vpop.f32.mrf.mxu0
        %v871 = vadd.f32 %v386, %v870
        %v872 = vpop.f32.mrf.mxu0
        %v873 = vadd.f32 %v382, %v872
        %v874 = vpop.f32.mrf.mxu0
        %v875 = vadd.f32 %v386, %v874
        %876 = vmatprep.mubr.bf16.mxu0 0
        %877 = vmatmul.mubr.bf16.gmra.mxu0 %v535
        %v878 = vpop.f32.mrf.mxu0
        %v879 = vadd.f32 %v382, %v878
        %v880 = vpop.f32.mrf.mxu0
        %v881 = vadd.f32 %v386, %v880
        %v882 = vpop.f32.mrf.mxu0
        %v883 = vadd.f32 %v382, %v882
        %v884 = vpop.f32.mrf.mxu0
        %v885 = vadd.f32 %v386, %v884
        %886 = vmatprep.mubr.bf16.mxu0 0
        %887 = vmatmul.mubr.bf16.gmra.mxu0 %v536
        %v888 = vpop.f32.mrf.mxu0
        %v889 = vadd.f32 %v382, %v888
        %v890 = vpop.f32.mrf.mxu0
        %v891 = vadd.f32 %v386, %v890
        %v892 = vpop.f32.mrf.mxu0
        %v893 = vadd.f32 %v382, %v892
        %v894 = vpop.f32.mrf.mxu0
        %v895 = vadd.f32 %v386, %v894
        %896 = vmatprep.mubr.bf16.mxu0 0
        %897 = vmatmul.mubr.bf16.gmra.mxu0 %v537
        %v898 = vpop.f32.mrf.mxu0
        %v899 = vadd.f32 %v382, %v898
        %v900 = vpop.f32.mrf.mxu0
        %v901 = vadd.f32 %v386, %v900
        %v902 = vpop.f32.mrf.mxu0
        %v903 = vadd.f32 %v382, %v902
        %v904 = vpop.f32.mrf.mxu0
        %v905 = vadd.f32 %v386, %v904
        %906 = vmatprep.mubr.bf16.mxu0 0
        %907 = vmatmul.mubr.bf16.gmra.mxu0 %v538
        %v908 = vpop.f32.mrf.mxu0
        %v909 = vadd.f32 %v382, %v908
        %v910 = vpop.f32.mrf.mxu0
        %v911 = vadd.f32 %v386, %v910
        %v912 = vpop.f32.mrf.mxu0
        %v913 = vadd.f32 %v382, %v912
        %v914 = vpop.f32.mrf.mxu0
        %v915 = vadd.f32 %v386, %v914
        %916 = vmatprep.mubr.bf16.mxu0 0
        %917 = vmatmul.mubr.bf16.gmra.mxu0 %v539
        %v918 = vpop.f32.mrf.mxu0
        %v919 = vadd.f32 %v382, %v918
        %v920 = vpop.f32.mrf.mxu0
        %v921 = vadd.f32 %v386, %v920
        %v922 = vpop.f32.mrf.mxu0
        %v923 = vadd.f32 %v382, %v922
        %v924 = vpop.f32.mrf.mxu0
        %v925 = vadd.f32 %v386, %v924
        %926 = vmatprep.mubr.bf16.mxu0 0
        %927 = vmatmul.mubr.bf16.gmra.mxu0 %v540
        %v928 = vpop.f32.mrf.mxu0
        %v929 = vadd.f32 %v382, %v928
        %v930 = vpop.f32.mrf.mxu0
        %v931 = vadd.f32 %v386, %v930
        %v932 = vpop.f32.mrf.mxu0
        %v933 = vadd.f32 %v382, %v932
        %v934 = vpop.f32.mrf.mxu0
        %v935 = vadd.f32 %v386, %v934
        %936 = vmatprep.mubr.bf16.mxu0 0
        %937 = vmatmul.mubr.bf16.gmra.mxu0 %v541
        %v938 = vpop.f32.mrf.mxu0
        %v939 = vadd.f32 %v382, %v938
        %v940 = vpop.f32.mrf.mxu0
        %v941 = vadd.f32 %v386, %v940
        %v942 = vpop.f32.mrf.mxu0
        %v943 = vadd.f32 %v382, %v942
        %v944 = vpop.f32.mrf.mxu0
        %v945 = vadd.f32 %v386, %v944
        %946 = vmatprep.mubr.bf16.mxu0 0
        %947 = vmatmul.mubr.bf16.gmra.mxu0 %v542
        %v948 = vpop.f32.mrf.mxu0
        %v949 = vadd.f32 %v382, %v948
        %v950 = vpop.f32.mrf.mxu0
        %v951 = vadd.f32 %v386, %v950
        %v952 = vpop.f32.mrf.mxu0
        %v953 = vadd.f32 %v382, %v952
        %v954 = vpop.f32.mrf.mxu0
        %v955 = vadd.f32 %v386, %v954
        %956 = vmatprep.mubr.bf16.mxu0 0
        %957 = vmatmul.mubr.bf16.gmra.mxu0 %v543
        %v958 = vpop.f32.mrf.mxu0
        %v959 = vadd.f32 %v382, %v958
        %v960 = vpop.f32.mrf.mxu0
        %v961 = vadd.f32 %v386, %v960
        %v962 = vpop.f32.mrf.mxu0
        %v963 = vadd.f32 %v382, %v962
        %v964 = vpop.f32.mrf.mxu0
        %v965 = vadd.f32 %v386, %v964
        %966 = vmatprep.mubr.bf16.mxu0 0
        %967 = vmatmul.mubr.bf16.gmra.mxu0 %v544
        %v968 = vpop.f32.mrf.mxu0
        %v969 = vadd.f32 %v382, %v968
        %v970 = vpop.f32.mrf.mxu0
        %v971 = vadd.f32 %v386, %v970
        %v972 = vpop.f32.mrf.mxu0
        %v973 = vadd.f32 %v382, %v972
        %v974 = vpop.f32.mrf.mxu0
        %v975 = vadd.f32 %v386, %v974
        %976 = vmatprep.mubr.bf16.mxu0 0
        %977 = vmatmul.mubr.bf16.gmra.mxu0 %v545
        %v978 = vpop.f32.mrf.mxu0
        %v979 = vadd.f32 %v382, %v978
        %v980 = vpop.f32.mrf.mxu0
        %v981 = vadd.f32 %v386, %v980
        %v982 = vpop.f32.mrf.mxu0
        %v983 = vadd.f32 %v382, %v982
        %v984 = vpop.f32.mrf.mxu0
        %v985 = vadd.f32 %v386, %v984
        %986 = vmatprep.mubr.bf16.mxu0 0
        %987 = vmatmul.mubr.bf16.gmra.mxu0 %v546
        %v988 = vpop.f32.mrf.mxu0
        %v989 = vadd.f32 %v382, %v988
        %v990 = vpop.f32.mrf.mxu0
        %v991 = vadd.f32 %v386, %v990
        %v992 = vpop.f32.mrf.mxu0
        %v993 = vadd.f32 %v382, %v992
        %v994 = vpop.f32.mrf.mxu0
        %v995 = vadd.f32 %v386, %v994
        %996 = vmatprep.mubr.bf16.mxu0 0
        %997 = vmatmul.mubr.bf16.gmra.mxu0 %v547
        %v998 = vpop.f32.mrf.mxu0
        %v999 = vadd.f32 %v382, %v998
        %v1000 = vpop.f32.mrf.mxu0
        %v1001 = vadd.f32 %v386, %v1000
        %v1002 = vpop.f32.mrf.mxu0
        %v1003 = vadd.f32 %v382, %v1002
        %v1004 = vpop.f32.mrf.mxu0
        %v1005 = vadd.f32 %v386, %v1004
        %1006 = vmatprep.mubr.bf16.mxu0 0
        %1007 = vmatmul.mubr.bf16.gmra.mxu0 %v548
        %v1008 = vpop.f32.mrf.mxu0
        %v1009 = vadd.f32 %v382, %v1008
        %v1010 = vpop.f32.mrf.mxu0
        %v1011 = vadd.f32 %v386, %v1010
        %v1012 = vpop.f32.mrf.mxu0
        %v1013 = vadd.f32 %v382, %v1012
        %v1014 = vpop.f32.mrf.mxu0
        %v1015 = vadd.f32 %v386, %v1014
        %1016 = vmatprep.mubr.bf16.mxu0 0
        %1017 = vmatmul.mubr.bf16.gmra.mxu0 %v549
        %v1018 = vpop.f32.mrf.mxu0
        %v1019 = vadd.f32 %v382, %v1018
        %v1020 = vpop.f32.mrf.mxu0
        %v1021 = vadd.f32 %v386, %v1020
        %v1022 = vpop.f32.mrf.mxu0
        %v1023 = vadd.f32 %v382, %v1022
        %v1024 = vpop.f32.mrf.mxu0
        %v1025 = vadd.f32 %v386, %v1024
        %1026 = vmatprep.mubr.bf16.mxu0 0
        %1027 = vmatmul.mubr.bf16.gmra.mxu0 %v550
        %v1028 = vpop.f32.mrf.mxu0
        %v1029 = vadd.f32 %v382, %v1028
        %v1030 = vpop.f32.mrf.mxu0
        %v1031 = vadd.f32 %v386, %v1030
        %v1032 = vpop.f32.mrf.mxu0
        %v1033 = vadd.f32 %v382, %v1032
        %v1034 = vpop.f32.mrf.mxu0
        %v1035 = vadd.f32 %v386, %v1034
        %1036 = vmatprep.mubr.bf16.mxu0 0
        %1037 = vmatmul.mubr.bf16.gmra.mxu0 %v551
        %v1038 = vpop.f32.mrf.mxu0
        %v1039 = vadd.f32 %v382, %v1038
        %v1040 = vpop.f32.mrf.mxu0
        %v1041 = vadd.f32 %v386, %v1040
        %v1042 = vpop.f32.mrf.mxu0
        %v1043 = vadd.f32 %v382, %v1042
        %v1044 = vpop.f32.mrf.mxu0
        %v1045 = vadd.f32 %v386, %v1044
        %1046 = vmatprep.mubr.bf16.mxu0 0
        %1047 = vmatmul.mubr.bf16.gmra.mxu0 %v552
        %v1048 = vpop.f32.mrf.mxu0
        %v1049 = vadd.f32 %v382, %v1048
        %v1050 = vpop.f32.mrf.mxu0
        %v1051 = vadd.f32 %v386, %v1050
        %v1052 = vpop.f32.mrf.mxu0
        %v1053 = vadd.f32 %v382, %v1052
        %v1054 = vpop.f32.mrf.mxu0
        %v1055 = vadd.f32 %v386, %v1054
        %1056 = vmatprep.mubr.bf16.mxu0 0
        %1057 = vmatmul.mubr.bf16.gmra.mxu0 %v553
        %v1058 = vpop.f32.mrf.mxu0
        %v1059 = vadd.f32 %v382, %v1058
        %v1060 = vpop.f32.mrf.mxu0
        %v1061 = vadd.f32 %v386, %v1060
        %v1062 = vpop.f32.mrf.mxu0
        %v1063 = vadd.f32 %v382, %v1062
        %v1064 = vpop.f32.mrf.mxu0
        %v1065 = vadd.f32 %v386, %v1064
        %1066 = vdwg.mxu0
        %1067 = vmatprep.subr.bf16.mxu0 0
        %1068 = vmatpush1.bf16.msra.mxu0 %v689
        %1069 = vmatprep.subr.bf16.mxu0 0
        %1070 = vmatpush1.bf16.msra.mxu0 %v686
        %1071 = vmatprep.subr.bf16.mxu0 0
        %1072 = vmatpush1.bf16.msra.mxu0 %v683
        %1073 = vmatprep.subr.bf16.mxu0 0
        %1074 = vmatpush1.bf16.msra.mxu0 %v680
        %1075 = vmatprep.subr.bf16.mxu0 0
        %1076 = vmatpush1.bf16.msra.mxu0 %v677
        %1077 = vmatprep.subr.bf16.mxu0 0
        %1078 = vmatpush1.bf16.msra.mxu0 %v674
        %1079 = vmatprep.subr.bf16.mxu0 0
        %1080 = vmatpush1.bf16.msra.mxu0 %v671
        %1081 = vmatprep.subr.bf16.mxu0 0
        %1082 = vmatpush1.bf16.msra.mxu0 %v668
        %1083 = vmatprep.subr.bf16.mxu0 0
        %1084 = vmatpush2.bf16.msra.mxu0 0
        %1085 = vmatprep.subr.bf16.mxu0 0
        %1086 = vmatpush2.bf16.msra.mxu0 0
        %1087 = vmatprep.subr.bf16.mxu0 0
        %1088 = vmatpush2.bf16.msra.mxu0 0
        %1089 = vmatprep.subr.bf16.mxu0 0
        %1090 = vmatpush2.bf16.msra.mxu0 0
        %1091 = vmatprep.subr.bf16.mxu0 0
        %1092 = vmatpush2.bf16.msra.mxu0 0
        %1093 = vmatprep.subr.bf16.mxu0 0
        %1094 = vmatpush2.bf16.msra.mxu0 0
        %1095 = vmatprep.subr.bf16.mxu0 0
        %1096 = vmatpush2.bf16.msra.mxu0 0
        %1097 = vmatprep.subr.bf16.mxu0 0
        %1098 = vmatpush2.bf16.msra.mxu0 0
        %1099 = vmatprep.mubr.bf16.mxu0 0
        %1100 = vmatmul.mubr.bf16.gmra.mxu0 %v522
        %v1101 = vpop.f32.mrf.mxu0
        %v1102 = vadd.f32 %v390, %v1101
        %v1103 = vpop.f32.mrf.mxu0
        %v1104 = vpop.f32.mrf.mxu0
        %v1105 = vadd.f32 %v390, %v1104
        %v1106 = vpop.f32.mrf.mxu0
        %1107 = vmatprep.mubr.bf16.mxu0 0
        %1108 = vmatmul.mubr.bf16.gmra.mxu0 %v523
        %v1109 = vpop.f32.mrf.mxu0
        %v1110 = vadd.f32 %v390, %v1109
        %v1111 = vpop.f32.mrf.mxu0
        %v1112 = vpop.f32.mrf.mxu0
        %v1113 = vadd.f32 %v390, %v1112
        %v1114 = vpop.f32.mrf.mxu0
        %1115 = vmatprep.mubr.bf16.mxu0 0
        %1116 = vmatmul.mubr.bf16.gmra.mxu0 %v524
        %v1117 = vpop.f32.mrf.mxu0
        %v1118 = vadd.f32 %v390, %v1117
        %v1119 = vpop.f32.mrf.mxu0
        %v1120 = vpop.f32.mrf.mxu0
        %v1121 = vadd.f32 %v390, %v1120
        %v1122 = vpop.f32.mrf.mxu0
        %1123 = vmatprep.mubr.bf16.mxu0 0
        %1124 = vmatmul.mubr.bf16.gmra.mxu0 %v525
        %v1125 = vpop.f32.mrf.mxu0
        %v1126 = vadd.f32 %v390, %v1125
        %v1127 = vpop.f32.mrf.mxu0
        %v1128 = vpop.f32.mrf.mxu0
        %v1129 = vadd.f32 %v390, %v1128
        %v1130 = vpop.f32.mrf.mxu0
        %1131 = vmatprep.mubr.bf16.mxu0 0
        %1132 = vmatmul.mubr.bf16.gmra.mxu0 %v526
        %v1133 = vpop.f32.mrf.mxu0
        %v1134 = vadd.f32 %v390, %v1133
        %v1135 = vpop.f32.mrf.mxu0
        %v1136 = vpop.f32.mrf.mxu0
        %v1137 = vadd.f32 %v390, %v1136
        %v1138 = vpop.f32.mrf.mxu0
        %1139 = vmatprep.mubr.bf16.mxu0 0
        %1140 = vmatmul.mubr.bf16.gmra.mxu0 %v527
        %v1141 = vpop.f32.mrf.mxu0
        %v1142 = vadd.f32 %v390, %v1141
        %v1143 = vpop.f32.mrf.mxu0
        %v1144 = vpop.f32.mrf.mxu0
        %v1145 = vadd.f32 %v390, %v1144
        %v1146 = vpop.f32.mrf.mxu0
        %1147 = vmatprep.mubr.bf16.mxu0 0
        %1148 = vmatmul.mubr.bf16.gmra.mxu0 %v528
        %v1149 = vpop.f32.mrf.mxu0
        %v1150 = vadd.f32 %v390, %v1149
        %v1151 = vpop.f32.mrf.mxu0
        %v1152 = vpop.f32.mrf.mxu0
        %v1153 = vadd.f32 %v390, %v1152
        %v1154 = vpop.f32.mrf.mxu0
        %1155 = vmatprep.mubr.bf16.mxu0 0
        %1156 = vmatmul.mubr.bf16.gmra.mxu0 %v529
        %v1157 = vpop.f32.mrf.mxu0
        %v1158 = vadd.f32 %v390, %v1157
        %v1159 = vpop.f32.mrf.mxu0
        %v1160 = vpop.f32.mrf.mxu0
        %v1161 = vadd.f32 %v390, %v1160
        %v1162 = vpop.f32.mrf.mxu0
        %1163 = vmatprep.mubr.bf16.mxu0 0
        %1164 = vmatmul.mubr.bf16.gmra.mxu0 %v530
        %v1165 = vpop.f32.mrf.mxu0
        %v1166 = vadd.f32 %v390, %v1165
        %v1167 = vpop.f32.mrf.mxu0
        %v1168 = vpop.f32.mrf.mxu0
        %v1169 = vadd.f32 %v390, %v1168
        %v1170 = vpop.f32.mrf.mxu0
        %1171 = vmatprep.mubr.bf16.mxu0 0
        %1172 = vmatmul.mubr.bf16.gmra.mxu0 %v531
        %v1173 = vpop.f32.mrf.mxu0
        %v1174 = vadd.f32 %v390, %v1173
        %v1175 = vpop.f32.mrf.mxu0
        %v1176 = vpop.f32.mrf.mxu0
        %v1177 = vadd.f32 %v390, %v1176
        %v1178 = vpop.f32.mrf.mxu0
        %1179 = vmatprep.mubr.bf16.mxu0 0
        %1180 = vmatmul.mubr.bf16.gmra.mxu0 %v532
        %v1181 = vpop.f32.mrf.mxu0
        %v1182 = vadd.f32 %v390, %v1181
        %v1183 = vpop.f32.mrf.mxu0
        %v1184 = vpop.f32.mrf.mxu0
        %v1185 = vadd.f32 %v390, %v1184
        %v1186 = vpop.f32.mrf.mxu0
        %1187 = vmatprep.mubr.bf16.mxu0 0
        %1188 = vmatmul.mubr.bf16.gmra.mxu0 %v533
        %v1189 = vpop.f32.mrf.mxu0
        %v1190 = vadd.f32 %v390, %v1189
        %v1191 = vpop.f32.mrf.mxu0
        %v1192 = vpop.f32.mrf.mxu0
        %v1193 = vadd.f32 %v390, %v1192
        %v1194 = vpop.f32.mrf.mxu0
        %1195 = vmatprep.mubr.bf16.mxu0 0
        %1196 = vmatmul.mubr.bf16.gmra.mxu0 %v534
        %v1197 = vpop.f32.mrf.mxu0
        %v1198 = vadd.f32 %v390, %v1197
        %v1199 = vpop.f32.mrf.mxu0
        %v1200 = vpop.f32.mrf.mxu0
        %v1201 = vadd.f32 %v390, %v1200
        %v1202 = vpop.f32.mrf.mxu0
        %1203 = vmatprep.mubr.bf16.mxu0 0
        %1204 = vmatmul.mubr.bf16.gmra.mxu0 %v535
        %v1205 = vpop.f32.mrf.mxu0
        %v1206 = vadd.f32 %v390, %v1205
        %v1207 = vpop.f32.mrf.mxu0
        %v1208 = vpop.f32.mrf.mxu0
        %v1209 = vadd.f32 %v390, %v1208
        %v1210 = vpop.f32.mrf.mxu0
        %1211 = vmatprep.mubr.bf16.mxu0 0
        %1212 = vmatmul.mubr.bf16.gmra.mxu0 %v536
        %v1213 = vpop.f32.mrf.mxu0
        %v1214 = vadd.f32 %v390, %v1213
        %v1215 = vpop.f32.mrf.mxu0
        %v1216 = vpop.f32.mrf.mxu0
        %v1217 = vadd.f32 %v390, %v1216
        %v1218 = vpop.f32.mrf.mxu0
        %1219 = vmatprep.mubr.bf16.mxu0 0
        %1220 = vmatmul.mubr.bf16.gmra.mxu0 %v537
        %v1221 = vpop.f32.mrf.mxu0
        %v1222 = vadd.f32 %v390, %v1221
        %v1223 = vpop.f32.mrf.mxu0
        %v1224 = vpop.f32.mrf.mxu0
        %v1225 = vadd.f32 %v390, %v1224
        %v1226 = vpop.f32.mrf.mxu0
        %1227 = vmatprep.mubr.bf16.mxu0 0
        %1228 = vmatmul.mubr.bf16.gmra.mxu0 %v538
        %v1229 = vpop.f32.mrf.mxu0
        %v1230 = vadd.f32 %v390, %v1229
        %v1231 = vpop.f32.mrf.mxu0
        %v1232 = vpop.f32.mrf.mxu0
        %v1233 = vadd.f32 %v390, %v1232
        %v1234 = vpop.f32.mrf.mxu0
        %1235 = vmatprep.mubr.bf16.mxu0 0
        %1236 = vmatmul.mubr.bf16.gmra.mxu0 %v539
        %v1237 = vpop.f32.mrf.mxu0
        %v1238 = vadd.f32 %v390, %v1237
        %v1239 = vpop.f32.mrf.mxu0
        %v1240 = vpop.f32.mrf.mxu0
        %v1241 = vadd.f32 %v390, %v1240
        %v1242 = vpop.f32.mrf.mxu0
        %1243 = vmatprep.mubr.bf16.mxu0 0
        %1244 = vmatmul.mubr.bf16.gmra.mxu0 %v540
        %v1245 = vpop.f32.mrf.mxu0
        %v1246 = vadd.f32 %v390, %v1245
        %v1247 = vpop.f32.mrf.mxu0
        %v1248 = vpop.f32.mrf.mxu0
        %v1249 = vadd.f32 %v390, %v1248
        %v1250 = vpop.f32.mrf.mxu0
        %1251 = vmatprep.mubr.bf16.mxu0 0
        %1252 = vmatmul.mubr.bf16.gmra.mxu0 %v541
        %v1253 = vpop.f32.mrf.mxu0
        %v1254 = vadd.f32 %v390, %v1253
        %v1255 = vpop.f32.mrf.mxu0
        %v1256 = vpop.f32.mrf.mxu0
        %v1257 = vadd.f32 %v390, %v1256
        %v1258 = vpop.f32.mrf.mxu0
        %1259 = vmatprep.mubr.bf16.mxu0 0
        %1260 = vmatmul.mubr.bf16.gmra.mxu0 %v542
        %v1261 = vpop.f32.mrf.mxu0
        %v1262 = vadd.f32 %v390, %v1261
        %v1263 = vpop.f32.mrf.mxu0
        %v1264 = vpop.f32.mrf.mxu0
        %v1265 = vadd.f32 %v390, %v1264
        %v1266 = vpop.f32.mrf.mxu0
        %1267 = vmatprep.mubr.bf16.mxu0 0
        %1268 = vmatmul.mubr.bf16.gmra.mxu0 %v543
        %v1269 = vpop.f32.mrf.mxu0
        %v1270 = vadd.f32 %v390, %v1269
        %v1271 = vpop.f32.mrf.mxu0
        %v1272 = vpop.f32.mrf.mxu0
        %v1273 = vadd.f32 %v390, %v1272
        %v1274 = vpop.f32.mrf.mxu0
        %1275 = vmatprep.mubr.bf16.mxu0 0
        %1276 = vmatmul.mubr.bf16.gmra.mxu0 %v544
        %v1277 = vpop.f32.mrf.mxu0
        %v1278 = vadd.f32 %v390, %v1277
        %v1279 = vpop.f32.mrf.mxu0
        %v1280 = vpop.f32.mrf.mxu0
        %v1281 = vadd.f32 %v390, %v1280
        %v1282 = vpop.f32.mrf.mxu0
        %1283 = vmatprep.mubr.bf16.mxu0 0
        %1284 = vmatmul.mubr.bf16.gmra.mxu0 %v545
        %v1285 = vpop.f32.mrf.mxu0
        %v1286 = vadd.f32 %v390, %v1285
        %v1287 = vpop.f32.mrf.mxu0
        %v1288 = vpop.f32.mrf.mxu0
        %v1289 = vadd.f32 %v390, %v1288
        %v1290 = vpop.f32.mrf.mxu0
        %1291 = vmatprep.mubr.bf16.mxu0 0
        %1292 = vmatmul.mubr.bf16.gmra.mxu0 %v546
        %v1293 = vpop.f32.mrf.mxu0
        %v1294 = vadd.f32 %v390, %v1293
        %v1295 = vpop.f32.mrf.mxu0
        %v1296 = vpop.f32.mrf.mxu0
        %v1297 = vadd.f32 %v390, %v1296
        %v1298 = vpop.f32.mrf.mxu0
        %1299 = vmatprep.mubr.bf16.mxu0 0
        %1300 = vmatmul.mubr.bf16.gmra.mxu0 %v547
        %v1301 = vpop.f32.mrf.mxu0
        %v1302 = vadd.f32 %v390, %v1301
        %v1303 = vpop.f32.mrf.mxu0
        %v1304 = vpop.f32.mrf.mxu0
        %v1305 = vadd.f32 %v390, %v1304
        %v1306 = vpop.f32.mrf.mxu0
        %1307 = vmatprep.mubr.bf16.mxu0 0
        %1308 = vmatmul.mubr.bf16.gmra.mxu0 %v548
        %v1309 = vpop.f32.mrf.mxu0
        %v1310 = vadd.f32 %v390, %v1309
        %v1311 = vpop.f32.mrf.mxu0
        %v1312 = vpop.f32.mrf.mxu0
        %v1313 = vadd.f32 %v390, %v1312
        %v1314 = vpop.f32.mrf.mxu0
        %1315 = vmatprep.mubr.bf16.mxu0 0
        %1316 = vmatmul.mubr.bf16.gmra.mxu0 %v549
        %v1317 = vpop.f32.mrf.mxu0
        %v1318 = vadd.f32 %v390, %v1317
        %v1319 = vpop.f32.mrf.mxu0
        %v1320 = vpop.f32.mrf.mxu0
        %v1321 = vadd.f32 %v390, %v1320
        %v1322 = vpop.f32.mrf.mxu0
        %1323 = vmatprep.mubr.bf16.mxu0 0
        %1324 = vmatmul.mubr.bf16.gmra.mxu0 %v550
        %v1325 = vpop.f32.mrf.mxu0
        %v1326 = vadd.f32 %v390, %v1325
        %v1327 = vpop.f32.mrf.mxu0
        %v1328 = vpop.f32.mrf.mxu0
        %v1329 = vadd.f32 %v390, %v1328
        %v1330 = vpop.f32.mrf.mxu0
        %1331 = vmatprep.mubr.bf16.mxu0 0
        %1332 = vmatmul.mubr.bf16.gmra.mxu0 %v551
        %v1333 = vpop.f32.mrf.mxu0
        %v1334 = vadd.f32 %v390, %v1333
        %v1335 = vpop.f32.mrf.mxu0
        %v1336 = vpop.f32.mrf.mxu0
        %v1337 = vadd.f32 %v390, %v1336
        %v1338 = vpop.f32.mrf.mxu0
        %1339 = vmatprep.mubr.bf16.mxu0 0
        %1340 = vmatmul.mubr.bf16.gmra.mxu0 %v552
        %v1341 = vpop.f32.mrf.mxu0
        %v1342 = vadd.f32 %v390, %v1341
        %v1343 = vpop.f32.mrf.mxu0
        %v1344 = vpop.f32.mrf.mxu0
        %v1345 = vadd.f32 %v390, %v1344
        %v1346 = vpop.f32.mrf.mxu0
        %1347 = vmatprep.mubr.bf16.mxu0 0
        %1348 = vmatmul.mubr.bf16.gmra.mxu0 %v553
        %v1349 = vpop.f32.mrf.mxu0
        %v1350 = vadd.f32 %v390, %v1349
        %v1351 = vpop.f32.mrf.mxu0
        %v1352 = vpop.f32.mrf.mxu0
        %v1353 = vadd.f32 %v390, %v1352
        %v1354 = vpop.f32.mrf.mxu0
        %1355 = vdwg.mxu0
        %v1356 = vpack.c.bf16 %v753, %v749
        %v1357 = vpack.c.bf16 %v763, %v759
        %v1358 = vpack.c.bf16 %v773, %v769
        %v1359 = vpack.c.bf16 %v783, %v779
        %v1360 = vpack.c.bf16 %v793, %v789
        %v1361 = vpack.c.bf16 %v803, %v799
        %v1362 = vpack.c.bf16 %v813, %v809
        %v1363 = vpack.c.bf16 %v823, %v819
        %v1364 = vpack.c.bf16 %v833, %v829
        %v1365 = vpack.c.bf16 %v843, %v839
        %v1366 = vpack.c.bf16 %v853, %v849
        %v1367 = vpack.c.bf16 %v863, %v859
        %v1368 = vpack.c.bf16 %v873, %v869
        %v1369 = vpack.c.bf16 %v883, %v879
        %v1370 = vpack.c.bf16 %v893, %v889
        %v1371 = vpack.c.bf16 %v903, %v899
        %v1372 = vpack.c.bf16 %v913, %v909
        %v1373 = vpack.c.bf16 %v923, %v919
        %v1374 = vpack.c.bf16 %v933, %v929
        %v1375 = vpack.c.bf16 %v943, %v939
        %v1376 = vpack.c.bf16 %v953, %v949
        %v1377 = vpack.c.bf16 %v963, %v959
        %v1378 = vpack.c.bf16 %v973, %v969
        %v1379 = vpack.c.bf16 %v983, %v979
        %v1380 = vpack.c.bf16 %v993, %v989
        %v1381 = vpack.c.bf16 %v1003, %v999
        %v1382 = vpack.c.bf16 %v1013, %v1009
        %v1383 = vpack.c.bf16 %v1023, %v1019
        %v1384 = vpack.c.bf16 %v1033, %v1029
        %v1385 = vpack.c.bf16 %v1043, %v1039
        %v1386 = vpack.c.bf16 %v1053, %v1049
        %v1387 = vpack.c.bf16 %v1063, %v1059
        %v1420 = vunpack.c.l.b16 %v1356
        %v1421 = vunpack.c.h.b16 %v1356
        %v1422 = vunpack.c.l.b16 %v1357
        %v1423 = vunpack.c.h.b16 %v1357
        %v1424 = vunpack.c.l.b16 %v1358
        %v1425 = vunpack.c.h.b16 %v1358
        %v1426 = vunpack.c.l.b16 %v1359
        %v1427 = vunpack.c.h.b16 %v1359
        %v1428 = vunpack.c.l.b16 %v1360
        %v1429 = vunpack.c.h.b16 %v1360
        %v1430 = vunpack.c.l.b16 %v1361
        %v1431 = vunpack.c.h.b16 %v1361
        %v1432 = vunpack.c.l.b16 %v1362
        %v1433 = vunpack.c.h.b16 %v1362
        %v1434 = vunpack.c.l.b16 %v1363
        %v1435 = vunpack.c.h.b16 %v1363
        %v1436 = vunpack.c.l.b16 %v1364
        %v1437 = vunpack.c.h.b16 %v1364
        %v1438 = vunpack.c.l.b16 %v1365
        %v1439 = vunpack.c.h.b16 %v1365
        %v1440 = vunpack.c.l.b16 %v1366
        %v1441 = vunpack.c.h.b16 %v1366
        %v1442 = vunpack.c.l.b16 %v1367
        %v1443 = vunpack.c.h.b16 %v1367
        %v1444 = vunpack.c.l.b16 %v1368
        %v1445 = vunpack.c.h.b16 %v1368
        %v1446 = vunpack.c.l.b16 %v1369
        %v1447 = vunpack.c.h.b16 %v1369
        %v1448 = vunpack.c.l.b16 %v1370
        %v1449 = vunpack.c.h.b16 %v1370
        %v1450 = vunpack.c.l.b16 %v1371
        %v1451 = vunpack.c.h.b16 %v1371
        %v1452 = vunpack.c.l.b16 %v1372
        %v1453 = vunpack.c.h.b16 %v1372
        %v1454 = vunpack.c.l.b16 %v1373
        %v1455 = vunpack.c.h.b16 %v1373
        %v1456 = vunpack.c.l.b16 %v1374
        %v1457 = vunpack.c.h.b16 %v1374
        %v1458 = vunpack.c.l.b16 %v1375
        %v1459 = vunpack.c.h.b16 %v1375
        %v1460 = vunpack.c.l.b16 %v1376
        %v1461 = vunpack.c.h.b16 %v1376
        %v1462 = vunpack.c.l.b16 %v1377
        %v1463 = vunpack.c.h.b16 %v1377
        %v1464 = vunpack.c.l.b16 %v1378
        %v1465 = vunpack.c.h.b16 %v1378
        %v1466 = vunpack.c.l.b16 %v1379
        %v1467 = vunpack.c.h.b16 %v1379
        %v1468 = vunpack.c.l.b16 %v1380
        %v1469 = vunpack.c.h.b16 %v1380
        %v1470 = vunpack.c.l.b16 %v1381
        %v1471 = vunpack.c.h.b16 %v1381
        %v1472 = vunpack.c.l.b16 %v1382
        %v1473 = vunpack.c.h.b16 %v1382
        %v1474 = vunpack.c.l.b16 %v1383
        %v1475 = vunpack.c.h.b16 %v1383
        %v1476 = vunpack.c.l.b16 %v1384
        %v1477 = vunpack.c.h.b16 %v1384
        %v1478 = vunpack.c.l.b16 %v1385
        %v1479 = vunpack.c.h.b16 %v1385
        %v1480 = vunpack.c.l.b16 %v1386
        %v1481 = vunpack.c.h.b16 %v1386
        %v1482 = vunpack.c.l.b16 %v1387
        %v1483 = vunpack.c.h.b16 %v1387
        %v1484 = vpack.c.b16 %v1420, %v1420
        %v1485 = vpack.c.b16 %v1421, %v1421
        %v1486 = vpack.c.b16 %v1422, %v1422
        %v1487 = vpack.c.b16 %v1423, %v1423
        %v1488 = vpack.c.b16 %v1424, %v1424
        %v1489 = vpack.c.b16 %v1425, %v1425
        %v1490 = vpack.c.b16 %v1426, %v1426
        %v1491 = vpack.c.b16 %v1427, %v1427
        %v1492 = vpack.c.b16 %v1428, %v1428
        %v1493 = vpack.c.b16 %v1429, %v1429
        %v1494 = vpack.c.b16 %v1430, %v1430
        %v1495 = vpack.c.b16 %v1431, %v1431
        %v1496 = vpack.c.b16 %v1432, %v1432
        %v1497 = vpack.c.b16 %v1433, %v1433
        %v1498 = vpack.c.b16 %v1434, %v1434
        %v1499 = vpack.c.b16 %v1435, %v1435
        %v1500 = vpack.c.b16 %v1436, %v1436
        %v1501 = vpack.c.b16 %v1437, %v1437
        %v1502 = vpack.c.b16 %v1438, %v1438
        %v1503 = vpack.c.b16 %v1439, %v1439
        %v1504 = vpack.c.b16 %v1440, %v1440
        %v1505 = vpack.c.b16 %v1441, %v1441
        %v1506 = vpack.c.b16 %v1442, %v1442
        %v1507 = vpack.c.b16 %v1443, %v1443
        %v1508 = vpack.c.b16 %v1444, %v1444
        %v1509 = vpack.c.b16 %v1445, %v1445
        %v1510 = vpack.c.b16 %v1446, %v1446
        %v1511 = vpack.c.b16 %v1447, %v1447
        %v1512 = vpack.c.b16 %v1448, %v1448
        %v1513 = vpack.c.b16 %v1449, %v1449
        %v1514 = vpack.c.b16 %v1450, %v1450
        %v1515 = vpack.c.b16 %v1451, %v1451
        %v1516 = vpack.c.b16 %v1452, %v1452
        %v1517 = vpack.c.b16 %v1453, %v1453
        %v1518 = vpack.c.b16 %v1454, %v1454
        %v1519 = vpack.c.b16 %v1455, %v1455
        %v1520 = vpack.c.b16 %v1456, %v1456
        %v1521 = vpack.c.b16 %v1457, %v1457
        %v1522 = vpack.c.b16 %v1458, %v1458
        %v1523 = vpack.c.b16 %v1459, %v1459
        %v1524 = vpack.c.b16 %v1460, %v1460
        %v1525 = vpack.c.b16 %v1461, %v1461
        %v1526 = vpack.c.b16 %v1462, %v1462
        %v1527 = vpack.c.b16 %v1463, %v1463
        %v1528 = vpack.c.b16 %v1464, %v1464
        %v1529 = vpack.c.b16 %v1465, %v1465
        %v1530 = vpack.c.b16 %v1466, %v1466
        %v1531 = vpack.c.b16 %v1467, %v1467
        %v1532 = vpack.c.b16 %v1468, %v1468
        %v1533 = vpack.c.b16 %v1469, %v1469
        %v1534 = vpack.c.b16 %v1470, %v1470
        %v1535 = vpack.c.b16 %v1471, %v1471
        %v1536 = vpack.c.b16 %v1472, %v1472
        %v1537 = vpack.c.b16 %v1473, %v1473
        %v1538 = vpack.c.b16 %v1474, %v1474
        %v1539 = vpack.c.b16 %v1475, %v1475
        %v1540 = vpack.c.b16 %v1476, %v1476
        %v1541 = vpack.c.b16 %v1477, %v1477
        %v1542 = vpack.c.b16 %v1478, %v1478
        %v1543 = vpack.c.b16 %v1479, %v1479
        %v1544 = vpack.c.b16 %v1480, %v1480
        %v1545 = vpack.c.b16 %v1481, %v1481
        %v1546 = vpack.c.b16 %v1482, %v1482
        %v1547 = vpack.c.b16 %v1483, %v1483
        %1612 = vst [vmem:[%s261] sm:$0xf] %v1484
        %1613 = vst [vmem:[%s261 + $0x4] sm:$0xf] %v1485
        %1614 = vst [vmem:[%s261 + $0x8] sm:$0xf] %v1486
        %1615 = vst [vmem:[%s261 + $0xc] sm:$0xf] %v1487
        %1616 = vst [vmem:[%s261 + $0x10] sm:$0xf] %v1488
        %1617 = vst [vmem:[%s261 + $0x14] sm:$0xf] %v1489
        %1618 = vst [vmem:[%s261 + $0x18] sm:$0xf] %v1490
        %1619 = vst [vmem:[%s261 + $0x1c] sm:$0xf] %v1491
        %1620 = vst [vmem:[%s261 + $0x20] sm:$0xf] %v1492
        %1621 = vst [vmem:[%s261 + $0x24] sm:$0xf] %v1493
        %1622 = vst [vmem:[%s261 + $0x28] sm:$0xf] %v1494
        %1623 = vst [vmem:[%s261 + $0x2c] sm:$0xf] %v1495
        %1624 = vst [vmem:[%s261 + $0x30] sm:$0xf] %v1496
        %1625 = vst [vmem:[%s261 + $0x34] sm:$0xf] %v1497
        %1626 = vst [vmem:[%s261 + $0x38] sm:$0xf] %v1498
        %1627 = vst [vmem:[%s261 + $0x3c] sm:$0xf] %v1499
        %1628 = vst [vmem:[%s261 + $0x40] sm:$0xf] %v1500
        %1629 = vst [vmem:[%s261 + $0x44] sm:$0xf] %v1501
        %1630 = vst [vmem:[%s261 + $0x48] sm:$0xf] %v1502
        %1631 = vst [vmem:[%s261 + $0x4c] sm:$0xf] %v1503
        %1632 = vst [vmem:[%s261 + $0x50] sm:$0xf] %v1504
        %1633 = vst [vmem:[%s261 + $0x54] sm:$0xf] %v1505
        %1634 = vst [vmem:[%s261 + $0x58] sm:$0xf] %v1506
        %1635 = vst [vmem:[%s261 + $0x5c] sm:$0xf] %v1507
        %1636 = vst [vmem:[%s261 + $0x60] sm:$0xf] %v1508
        %1637 = vst [vmem:[%s261 + $0x64] sm:$0xf] %v1509
        %1638 = vst [vmem:[%s261 + $0x68] sm:$0xf] %v1510
        %1639 = vst [vmem:[%s261 + $0x6c] sm:$0xf] %v1511
        %1640 = vst [vmem:[%s261 + $0x70] sm:$0xf] %v1512
        %1641 = vst [vmem:[%s261 + $0x74] sm:$0xf] %v1513
        %1642 = vst [vmem:[%s261 + $0x78] sm:$0xf] %v1514
        %1643 = vst [vmem:[%s261 + $0x7c] sm:$0xf] %v1515
        %1644 = vst [vmem:[%s261 + $0x80] sm:$0xf] %v1516
        %1645 = vst [vmem:[%s261 + $0x84] sm:$0xf] %v1517
        %1646 = vst [vmem:[%s261 + $0x88] sm:$0xf] %v1518
        %1647 = vst [vmem:[%s261 + $0x8c] sm:$0xf] %v1519
        %1648 = vst [vmem:[%s261 + $0x90] sm:$0xf] %v1520
        %1649 = vst [vmem:[%s261 + $0x94] sm:$0xf] %v1521
        %1650 = vst [vmem:[%s261 + $0x98] sm:$0xf] %v1522
        %1651 = vst [vmem:[%s261 + $0x9c] sm:$0xf] %v1523
        %1652 = vst [vmem:[%s261 + $0xa0] sm:$0xf] %v1524
        %1653 = vst [vmem:[%s261 + $0xa4] sm:$0xf] %v1525
        %1654 = vst [vmem:[%s261 + $0xa8] sm:$0xf] %v1526
        %1655 = vst [vmem:[%s261 + $0xac] sm:$0xf] %v1527
        %1656 = vst [vmem:[%s261 + $0xb0] sm:$0xf] %v1528
        %1657 = vst [vmem:[%s261 + $0xb4] sm:$0xf] %v1529
        %1658 = vst [vmem:[%s261 + $0xb8] sm:$0xf] %v1530
        %1659 = vst [vmem:[%s261 + $0xbc] sm:$0xf] %v1531
        %1660 = vst [vmem:[%s261 + $0xc0] sm:$0xf] %v1532
        %1661 = vst [vmem:[%s261 + $0xc4] sm:$0xf] %v1533
        %1662 = vst [vmem:[%s261 + $0xc8] sm:$0xf] %v1534
        %1663 = vst [vmem:[%s261 + $0xcc] sm:$0xf] %v1535
        %1664 = vst [vmem:[%s261 + $0xd0] sm:$0xf] %v1536
        %1665 = vst [vmem:[%s261 + $0xd4] sm:$0xf] %v1537
        %1666 = vst [vmem:[%s261 + $0xd8] sm:$0xf] %v1538
        %1667 = vst [vmem:[%s261 + $0xdc] sm:$0xf] %v1539
        %1668 = vst [vmem:[%s261 + $0xe0] sm:$0xf] %v1540
        %1669 = vst [vmem:[%s261 + $0xe4] sm:$0xf] %v1541
        %1670 = vst [vmem:[%s261 + $0xe8] sm:$0xf] %v1542
        %1671 = vst [vmem:[%s261 + $0xec] sm:$0xf] %v1543
        %1672 = vst [vmem:[%s261 + $0xf0] sm:$0xf] %v1544
        %1673 = vst [vmem:[%s261 + $0xf4] sm:$0xf] %v1545
        %1674 = vst [vmem:[%s261 + $0xf8] sm:$0xf] %v1546
        %1675 = vst [vmem:[%s261 + $0xfc] sm:$0xf] %v1547
        %v1676 = vpack.c.bf16 %v755, %v751
        %v1677 = vpack.c.bf16 %v765, %v761
        %v1678 = vpack.c.bf16 %v775, %v771
        %v1679 = vpack.c.bf16 %v785, %v781
        %v1680 = vpack.c.bf16 %v795, %v791
        %v1681 = vpack.c.bf16 %v805, %v801
        %v1682 = vpack.c.bf16 %v815, %v811
        %v1683 = vpack.c.bf16 %v825, %v821
        %v1684 = vpack.c.bf16 %v835, %v831
        %v1685 = vpack.c.bf16 %v845, %v841
        %v1686 = vpack.c.bf16 %v855, %v851
        %v1687 = vpack.c.bf16 %v865, %v861
        %v1688 = vpack.c.bf16 %v875, %v871
        %v1689 = vpack.c.bf16 %v885, %v881
        %v1690 = vpack.c.bf16 %v895, %v891
        %v1691 = vpack.c.bf16 %v905, %v901
        %v1692 = vpack.c.bf16 %v915, %v911
        %v1693 = vpack.c.bf16 %v925, %v921
        %v1694 = vpack.c.bf16 %v935, %v931
        %v1695 = vpack.c.bf16 %v945, %v941
        %v1696 = vpack.c.bf16 %v955, %v951
        %v1697 = vpack.c.bf16 %v965, %v961
        %v1698 = vpack.c.bf16 %v975, %v971
        %v1699 = vpack.c.bf16 %v985, %v981
        %v1700 = vpack.c.bf16 %v995, %v991
        %v1701 = vpack.c.bf16 %v1005, %v1001
        %v1702 = vpack.c.bf16 %v1015, %v1011
        %v1703 = vpack.c.bf16 %v1025, %v1021
        %v1704 = vpack.c.bf16 %v1035, %v1031
        %v1705 = vpack.c.bf16 %v1045, %v1041
        %v1706 = vpack.c.bf16 %v1055, %v1051
        %v1707 = vpack.c.bf16 %v1065, %v1061
        %v1740 = vunpack.c.l.b16 %v1676
        %v1741 = vunpack.c.h.b16 %v1676
        %v1742 = vunpack.c.l.b16 %v1677
        %v1743 = vunpack.c.h.b16 %v1677
        %v1744 = vunpack.c.l.b16 %v1678
        %v1745 = vunpack.c.h.b16 %v1678
        %v1746 = vunpack.c.l.b16 %v1679
        %v1747 = vunpack.c.h.b16 %v1679
        %v1748 = vunpack.c.l.b16 %v1680
        %v1749 = vunpack.c.h.b16 %v1680
        %v1750 = vunpack.c.l.b16 %v1681
        %v1751 = vunpack.c.h.b16 %v1681
        %v1752 = vunpack.c.l.b16 %v1682
        %v1753 = vunpack.c.h.b16 %v1682
        %v1754 = vunpack.c.l.b16 %v1683
        %v1755 = vunpack.c.h.b16 %v1683
        %v1756 = vunpack.c.l.b16 %v1684
        %v1757 = vunpack.c.h.b16 %v1684
        %v1758 = vunpack.c.l.b16 %v1685
        %v1759 = vunpack.c.h.b16 %v1685
        %v1760 = vunpack.c.l.b16 %v1686
        %v1761 = vunpack.c.h.b16 %v1686
        %v1762 = vunpack.c.l.b16 %v1687
        %v1763 = vunpack.c.h.b16 %v1687
        %v1764 = vunpack.c.l.b16 %v1688
        %v1765 = vunpack.c.h.b16 %v1688
        %v1766 = vunpack.c.l.b16 %v1689
        %v1767 = vunpack.c.h.b16 %v1689
        %v1768 = vunpack.c.l.b16 %v1690
        %v1769 = vunpack.c.h.b16 %v1690
        %v1770 = vunpack.c.l.b16 %v1691
        %v1771 = vunpack.c.h.b16 %v1691
        %v1772 = vunpack.c.l.b16 %v1692
        %v1773 = vunpack.c.h.b16 %v1692
        %v1774 = vunpack.c.l.b16 %v1693
        %v1775 = vunpack.c.h.b16 %v1693
        %v1776 = vunpack.c.l.b16 %v1694
        %v1777 = vunpack.c.h.b16 %v1694
        %v1778 = vunpack.c.l.b16 %v1695
        %v1779 = vunpack.c.h.b16 %v1695
        %v1780 = vunpack.c.l.b16 %v1696
        %v1781 = vunpack.c.h.b16 %v1696
        %v1782 = vunpack.c.l.b16 %v1697
        %v1783 = vunpack.c.h.b16 %v1697
        %v1784 = vunpack.c.l.b16 %v1698
        %v1785 = vunpack.c.h.b16 %v1698
        %v1786 = vunpack.c.l.b16 %v1699
        %v1787 = vunpack.c.h.b16 %v1699
        %v1788 = vunpack.c.l.b16 %v1700
        %v1789 = vunpack.c.h.b16 %v1700
        %v1790 = vunpack.c.l.b16 %v1701
        %v1791 = vunpack.c.h.b16 %v1701
        %v1792 = vunpack.c.l.b16 %v1702
        %v1793 = vunpack.c.h.b16 %v1702
        %v1794 = vunpack.c.l.b16 %v1703
        %v1795 = vunpack.c.h.b16 %v1703
        %v1796 = vunpack.c.l.b16 %v1704
        %v1797 = vunpack.c.h.b16 %v1704
        %v1798 = vunpack.c.l.b16 %v1705
        %v1799 = vunpack.c.h.b16 %v1705
        %v1800 = vunpack.c.l.b16 %v1706
        %v1801 = vunpack.c.h.b16 %v1706
        %v1802 = vunpack.c.l.b16 %v1707
        %v1803 = vunpack.c.h.b16 %v1707
        %v1804 = vpack.c.b16 %v1740, %v1740
        %v1805 = vpack.c.b16 %v1741, %v1741
        %v1806 = vpack.c.b16 %v1742, %v1742
        %v1807 = vpack.c.b16 %v1743, %v1743
        %v1808 = vpack.c.b16 %v1744, %v1744
        %v1809 = vpack.c.b16 %v1745, %v1745
        %v1810 = vpack.c.b16 %v1746, %v1746
        %v1811 = vpack.c.b16 %v1747, %v1747
        %v1812 = vpack.c.b16 %v1748, %v1748
        %v1813 = vpack.c.b16 %v1749, %v1749
        %v1814 = vpack.c.b16 %v1750, %v1750
        %v1815 = vpack.c.b16 %v1751, %v1751
        %v1816 = vpack.c.b16 %v1752, %v1752
        %v1817 = vpack.c.b16 %v1753, %v1753
        %v1818 = vpack.c.b16 %v1754, %v1754
        %v1819 = vpack.c.b16 %v1755, %v1755
        %v1820 = vpack.c.b16 %v1756, %v1756
        %v1821 = vpack.c.b16 %v1757, %v1757
        %v1822 = vpack.c.b16 %v1758, %v1758
        %v1823 = vpack.c.b16 %v1759, %v1759
        %v1824 = vpack.c.b16 %v1760, %v1760
        %v1825 = vpack.c.b16 %v1761, %v1761
        %v1826 = vpack.c.b16 %v1762, %v1762
        %v1827 = vpack.c.b16 %v1763, %v1763
        %v1828 = vpack.c.b16 %v1764, %v1764
        %v1829 = vpack.c.b16 %v1765, %v1765
        %v1830 = vpack.c.b16 %v1766, %v1766
        %v1831 = vpack.c.b16 %v1767, %v1767
        %v1832 = vpack.c.b16 %v1768, %v1768
        %v1833 = vpack.c.b16 %v1769, %v1769
        %v1834 = vpack.c.b16 %v1770, %v1770
        %v1835 = vpack.c.b16 %v1771, %v1771
        %v1836 = vpack.c.b16 %v1772, %v1772
        %v1837 = vpack.c.b16 %v1773, %v1773
        %v1838 = vpack.c.b16 %v1774, %v1774
        %v1839 = vpack.c.b16 %v1775, %v1775
        %v1840 = vpack.c.b16 %v1776, %v1776
        %v1841 = vpack.c.b16 %v1777, %v1777
        %v1842 = vpack.c.b16 %v1778, %v1778
        %v1843 = vpack.c.b16 %v1779, %v1779
        %v1844 = vpack.c.b16 %v1780, %v1780
        %v1845 = vpack.c.b16 %v1781, %v1781
        %v1846 = vpack.c.b16 %v1782, %v1782
        %v1847 = vpack.c.b16 %v1783, %v1783
        %v1848 = vpack.c.b16 %v1784, %v1784
        %v1849 = vpack.c.b16 %v1785, %v1785
        %v1850 = vpack.c.b16 %v1786, %v1786
        %v1851 = vpack.c.b16 %v1787, %v1787
        %v1852 = vpack.c.b16 %v1788, %v1788
        %v1853 = vpack.c.b16 %v1789, %v1789
        %v1854 = vpack.c.b16 %v1790, %v1790
        %v1855 = vpack.c.b16 %v1791, %v1791
        %v1856 = vpack.c.b16 %v1792, %v1792
        %v1857 = vpack.c.b16 %v1793, %v1793
        %v1858 = vpack.c.b16 %v1794, %v1794
        %v1859 = vpack.c.b16 %v1795, %v1795
        %v1860 = vpack.c.b16 %v1796, %v1796
        %v1861 = vpack.c.b16 %v1797, %v1797
        %v1862 = vpack.c.b16 %v1798, %v1798
        %v1863 = vpack.c.b16 %v1799, %v1799
        %v1864 = vpack.c.b16 %v1800, %v1800
        %v1865 = vpack.c.b16 %v1801, %v1801
        %v1866 = vpack.c.b16 %v1802, %v1802
        %v1867 = vpack.c.b16 %v1803, %v1803
        %1932 = vst [vmem:[%s268] sm:$0xf] %v1804
        %1933 = vst [vmem:[%s268 + $0x4] sm:$0xf] %v1805
        %1934 = vst [vmem:[%s268 + $0x8] sm:$0xf] %v1806
        %1935 = vst [vmem:[%s268 + $0xc] sm:$0xf] %v1807
        %1936 = vst [vmem:[%s268 + $0x10] sm:$0xf] %v1808
        %1937 = vst [vmem:[%s268 + $0x14] sm:$0xf] %v1809
        %1938 = vst [vmem:[%s268 + $0x18] sm:$0xf] %v1810
        %1939 = vst [vmem:[%s268 + $0x1c] sm:$0xf] %v1811
        %1940 = vst [vmem:[%s268 + $0x20] sm:$0xf] %v1812
        %1941 = vst [vmem:[%s268 + $0x24] sm:$0xf] %v1813
        %1942 = vst [vmem:[%s268 + $0x28] sm:$0xf] %v1814
        %1943 = vst [vmem:[%s268 + $0x2c] sm:$0xf] %v1815
        %1944 = vst [vmem:[%s268 + $0x30] sm:$0xf] %v1816
        %1945 = vst [vmem:[%s268 + $0x34] sm:$0xf] %v1817
        %1946 = vst [vmem:[%s268 + $0x38] sm:$0xf] %v1818
        %1947 = vst [vmem:[%s268 + $0x3c] sm:$0xf] %v1819
        %1948 = vst [vmem:[%s268 + $0x40] sm:$0xf] %v1820
        %1949 = vst [vmem:[%s268 + $0x44] sm:$0xf] %v1821
        %1950 = vst [vmem:[%s268 + $0x48] sm:$0xf] %v1822
        %1951 = vst [vmem:[%s268 + $0x4c] sm:$0xf] %v1823
        %1952 = vst [vmem:[%s268 + $0x50] sm:$0xf] %v1824
        %1953 = vst [vmem:[%s268 + $0x54] sm:$0xf] %v1825
        %1954 = vst [vmem:[%s268 + $0x58] sm:$0xf] %v1826
        %1955 = vst [vmem:[%s268 + $0x5c] sm:$0xf] %v1827
        %1956 = vst [vmem:[%s268 + $0x60] sm:$0xf] %v1828
        %1957 = vst [vmem:[%s268 + $0x64] sm:$0xf] %v1829
        %1958 = vst [vmem:[%s268 + $0x68] sm:$0xf] %v1830
        %1959 = vst [vmem:[%s268 + $0x6c] sm:$0xf] %v1831
        %1960 = vst [vmem:[%s268 + $0x70] sm:$0xf] %v1832
        %1961 = vst [vmem:[%s268 + $0x74] sm:$0xf] %v1833
        %1962 = vst [vmem:[%s268 + $0x78] sm:$0xf] %v1834
        %1963 = vst [vmem:[%s268 + $0x7c] sm:$0xf] %v1835
        %1964 = vst [vmem:[%s268 + $0x80] sm:$0xf] %v1836
        %1965 = vst [vmem:[%s268 + $0x84] sm:$0xf] %v1837
        %1966 = vst [vmem:[%s268 + $0x88] sm:$0xf] %v1838
        %1967 = vst [vmem:[%s268 + $0x8c] sm:$0xf] %v1839
        %1968 = vst [vmem:[%s268 + $0x90] sm:$0xf] %v1840
        %1969 = vst [vmem:[%s268 + $0x94] sm:$0xf] %v1841
        %1970 = vst [vmem:[%s268 + $0x98] sm:$0xf] %v1842
        %1971 = vst [vmem:[%s268 + $0x9c] sm:$0xf] %v1843
        %1972 = vst [vmem:[%s268 + $0xa0] sm:$0xf] %v1844
        %1973 = vst [vmem:[%s268 + $0xa4] sm:$0xf] %v1845
        %1974 = vst [vmem:[%s268 + $0xa8] sm:$0xf] %v1846
        %1975 = vst [vmem:[%s268 + $0xac] sm:$0xf] %v1847
        %1976 = vst [vmem:[%s268 + $0xb0] sm:$0xf] %v1848
        %1977 = vst [vmem:[%s268 + $0xb4] sm:$0xf] %v1849
        %1978 = vst [vmem:[%s268 + $0xb8] sm:$0xf] %v1850
        %1979 = vst [vmem:[%s268 + $0xbc] sm:$0xf] %v1851
        %1980 = vst [vmem:[%s268 + $0xc0] sm:$0xf] %v1852
        %1981 = vst [vmem:[%s268 + $0xc4] sm:$0xf] %v1853
        %1982 = vst [vmem:[%s268 + $0xc8] sm:$0xf] %v1854
        %1983 = vst [vmem:[%s268 + $0xcc] sm:$0xf] %v1855
        %1984 = vst [vmem:[%s268 + $0xd0] sm:$0xf] %v1856
        %1985 = vst [vmem:[%s268 + $0xd4] sm:$0xf] %v1857
        %1986 = vst [vmem:[%s268 + $0xd8] sm:$0xf] %v1858
        %1987 = vst [vmem:[%s268 + $0xdc] sm:$0xf] %v1859
        %1988 = vst [vmem:[%s268 + $0xe0] sm:$0xf] %v1860
        %1989 = vst [vmem:[%s268 + $0xe4] sm:$0xf] %v1861
        %1990 = vst [vmem:[%s268 + $0xe8] sm:$0xf] %v1862
        %1991 = vst [vmem:[%s268 + $0xec] sm:$0xf] %v1863
        %1992 = vst [vmem:[%s268 + $0xf0] sm:$0xf] %v1864
        %1993 = vst [vmem:[%s268 + $0xf4] sm:$0xf] %v1865
        %1994 = vst [vmem:[%s268 + $0xf8] sm:$0xf] %v1866
        %1995 = vst [vmem:[%s268 + $0xfc] sm:$0xf] %v1867
        %v1996 = vpack.c.bf16 %v1105, %v1102
        %v1997 = vpack.c.bf16 %v1113, %v1110
        %v1998 = vpack.c.bf16 %v1121, %v1118
        %v1999 = vpack.c.bf16 %v1129, %v1126
        %v2000 = vpack.c.bf16 %v1137, %v1134
        %v2001 = vpack.c.bf16 %v1145, %v1142
        %v2002 = vpack.c.bf16 %v1153, %v1150
        %v2003 = vpack.c.bf16 %v1161, %v1158
        %v2004 = vpack.c.bf16 %v1169, %v1166
        %v2005 = vpack.c.bf16 %v1177, %v1174
        %v2006 = vpack.c.bf16 %v1185, %v1182
        %v2007 = vpack.c.bf16 %v1193, %v1190
        %v2008 = vpack.c.bf16 %v1201, %v1198
        %v2009 = vpack.c.bf16 %v1209, %v1206
        %v2010 = vpack.c.bf16 %v1217, %v1214
        %v2011 = vpack.c.bf16 %v1225, %v1222
        %v2012 = vpack.c.bf16 %v1233, %v1230
        %v2013 = vpack.c.bf16 %v1241, %v1238
        %v2014 = vpack.c.bf16 %v1249, %v1246
        %v2015 = vpack.c.bf16 %v1257, %v1254
        %v2016 = vpack.c.bf16 %v1265, %v1262
        %v2017 = vpack.c.bf16 %v1273, %v1270
        %v2018 = vpack.c.bf16 %v1281, %v1278
        %v2019 = vpack.c.bf16 %v1289, %v1286
        %v2020 = vpack.c.bf16 %v1297, %v1294
        %v2021 = vpack.c.bf16 %v1305, %v1302
        %v2022 = vpack.c.bf16 %v1313, %v1310
        %v2023 = vpack.c.bf16 %v1321, %v1318
        %v2024 = vpack.c.bf16 %v1329, %v1326
        %v2025 = vpack.c.bf16 %v1337, %v1334
        %v2026 = vpack.c.bf16 %v1345, %v1342
        %v2027 = vpack.c.bf16 %v1353, %v1350
        %v2060 = vunpack.c.l.b16 %v1996
        %v2061 = vunpack.c.h.b16 %v1996
        %v2062 = vunpack.c.l.b16 %v1997
        %v2063 = vunpack.c.h.b16 %v1997
        %v2064 = vunpack.c.l.b16 %v1998
        %v2065 = vunpack.c.h.b16 %v1998
        %v2066 = vunpack.c.l.b16 %v1999
        %v2067 = vunpack.c.h.b16 %v1999
        %v2068 = vunpack.c.l.b16 %v2000
        %v2069 = vunpack.c.h.b16 %v2000
        %v2070 = vunpack.c.l.b16 %v2001
        %v2071 = vunpack.c.h.b16 %v2001
        %v2072 = vunpack.c.l.b16 %v2002
        %v2073 = vunpack.c.h.b16 %v2002
        %v2074 = vunpack.c.l.b16 %v2003
        %v2075 = vunpack.c.h.b16 %v2003
        %v2076 = vunpack.c.l.b16 %v2004
        %v2077 = vunpack.c.h.b16 %v2004
        %v2078 = vunpack.c.l.b16 %v2005
        %v2079 = vunpack.c.h.b16 %v2005
        %v2080 = vunpack.c.l.b16 %v2006
        %v2081 = vunpack.c.h.b16 %v2006
        %v2082 = vunpack.c.l.b16 %v2007
        %v2083 = vunpack.c.h.b16 %v2007
        %v2084 = vunpack.c.l.b16 %v2008
        %v2085 = vunpack.c.h.b16 %v2008
        %v2086 = vunpack.c.l.b16 %v2009
        %v2087 = vunpack.c.h.b16 %v2009
        %v2088 = vunpack.c.l.b16 %v2010
        %v2089 = vunpack.c.h.b16 %v2010
        %v2090 = vunpack.c.l.b16 %v2011
        %v2091 = vunpack.c.h.b16 %v2011
        %v2092 = vunpack.c.l.b16 %v2012
        %v2093 = vunpack.c.h.b16 %v2012
        %v2094 = vunpack.c.l.b16 %v2013
        %v2095 = vunpack.c.h.b16 %v2013
        %v2096 = vunpack.c.l.b16 %v2014
        %v2097 = vunpack.c.h.b16 %v2014
        %v2098 = vunpack.c.l.b16 %v2015
        %v2099 = vunpack.c.h.b16 %v2015
        %v2100 = vunpack.c.l.b16 %v2016
        %v2101 = vunpack.c.h.b16 %v2016
        %v2102 = vunpack.c.l.b16 %v2017
        %v2103 = vunpack.c.h.b16 %v2017
        %v2104 = vunpack.c.l.b16 %v2018
        %v2105 = vunpack.c.h.b16 %v2018
        %v2106 = vunpack.c.l.b16 %v2019
        %v2107 = vunpack.c.h.b16 %v2019
        %v2108 = vunpack.c.l.b16 %v2020
        %v2109 = vunpack.c.h.b16 %v2020
        %v2110 = vunpack.c.l.b16 %v2021
        %v2111 = vunpack.c.h.b16 %v2021
        %v2112 = vunpack.c.l.b16 %v2022
        %v2113 = vunpack.c.h.b16 %v2022
        %v2114 = vunpack.c.l.b16 %v2023
        %v2115 = vunpack.c.h.b16 %v2023
        %v2116 = vunpack.c.l.b16 %v2024
        %v2117 = vunpack.c.h.b16 %v2024
        %v2118 = vunpack.c.l.b16 %v2025
        %v2119 = vunpack.c.h.b16 %v2025
        %v2120 = vunpack.c.l.b16 %v2026
        %v2121 = vunpack.c.h.b16 %v2026
        %v2122 = vunpack.c.l.b16 %v2027
        %v2123 = vunpack.c.h.b16 %v2027
        %v2124 = vpack.c.b16 %v2060, %v2060
        %v2125 = vpack.c.b16 %v2061, %v2061
        %v2126 = vpack.c.b16 %v2062, %v2062
        %v2127 = vpack.c.b16 %v2063, %v2063
        %v2128 = vpack.c.b16 %v2064, %v2064
        %v2129 = vpack.c.b16 %v2065, %v2065
        %v2130 = vpack.c.b16 %v2066, %v2066
        %v2131 = vpack.c.b16 %v2067, %v2067
        %v2132 = vpack.c.b16 %v2068, %v2068
        %v2133 = vpack.c.b16 %v2069, %v2069
        %v2134 = vpack.c.b16 %v2070, %v2070
        %v2135 = vpack.c.b16 %v2071, %v2071
        %v2136 = vpack.c.b16 %v2072, %v2072
        %v2137 = vpack.c.b16 %v2073, %v2073
        %v2138 = vpack.c.b16 %v2074, %v2074
        %v2139 = vpack.c.b16 %v2075, %v2075
        %v2140 = vpack.c.b16 %v2076, %v2076
        %v2141 = vpack.c.b16 %v2077, %v2077
        %v2142 = vpack.c.b16 %v2078, %v2078
        %v2143 = vpack.c.b16 %v2079, %v2079
        %v2144 = vpack.c.b16 %v2080, %v2080
        %v2145 = vpack.c.b16 %v2081, %v2081
        %v2146 = vpack.c.b16 %v2082, %v2082
        %v2147 = vpack.c.b16 %v2083, %v2083
        %v2148 = vpack.c.b16 %v2084, %v2084
        %v2149 = vpack.c.b16 %v2085, %v2085
        %v2150 = vpack.c.b16 %v2086, %v2086
        %v2151 = vpack.c.b16 %v2087, %v2087
        %v2152 = vpack.c.b16 %v2088, %v2088
        %v2153 = vpack.c.b16 %v2089, %v2089
        %v2154 = vpack.c.b16 %v2090, %v2090
        %v2155 = vpack.c.b16 %v2091, %v2091
        %v2156 = vpack.c.b16 %v2092, %v2092
        %v2157 = vpack.c.b16 %v2093, %v2093
        %v2158 = vpack.c.b16 %v2094, %v2094
        %v2159 = vpack.c.b16 %v2095, %v2095
        %v2160 = vpack.c.b16 %v2096, %v2096
        %v2161 = vpack.c.b16 %v2097, %v2097
        %v2162 = vpack.c.b16 %v2098, %v2098
        %v2163 = vpack.c.b16 %v2099, %v2099
        %v2164 = vpack.c.b16 %v2100, %v2100
        %v2165 = vpack.c.b16 %v2101, %v2101
        %v2166 = vpack.c.b16 %v2102, %v2102
        %v2167 = vpack.c.b16 %v2103, %v2103
        %v2168 = vpack.c.b16 %v2104, %v2104
        %v2169 = vpack.c.b16 %v2105, %v2105
        %v2170 = vpack.c.b16 %v2106, %v2106
        %v2171 = vpack.c.b16 %v2107, %v2107
        %v2172 = vpack.c.b16 %v2108, %v2108
        %v2173 = vpack.c.b16 %v2109, %v2109
        %v2174 = vpack.c.b16 %v2110, %v2110
        %v2175 = vpack.c.b16 %v2111, %v2111
        %v2176 = vpack.c.b16 %v2112, %v2112
        %v2177 = vpack.c.b16 %v2113, %v2113
        %v2178 = vpack.c.b16 %v2114, %v2114
        %v2179 = vpack.c.b16 %v2115, %v2115
        %v2180 = vpack.c.b16 %v2116, %v2116
        %v2181 = vpack.c.b16 %v2117, %v2117
        %v2182 = vpack.c.b16 %v2118, %v2118
        %v2183 = vpack.c.b16 %v2119, %v2119
        %v2184 = vpack.c.b16 %v2120, %v2120
        %v2185 = vpack.c.b16 %v2121, %v2121
        %v2186 = vpack.c.b16 %v2122, %v2122
        %v2187 = vpack.c.b16 %v2123, %v2123
        %2252 = vst [vmem:[%s275] sm:$0xf] %v2124
        %2253 = vst [vmem:[%s275 + $0x4] sm:$0xf] %v2125
        %2254 = vst [vmem:[%s275 + $0x8] sm:$0xf] %v2126
        %2255 = vst [vmem:[%s275 + $0xc] sm:$0xf] %v2127
        %2256 = vst [vmem:[%s275 + $0x10] sm:$0xf] %v2128
        %2257 = vst [vmem:[%s275 + $0x14] sm:$0xf] %v2129
        %2258 = vst [vmem:[%s275 + $0x18] sm:$0xf] %v2130
        %2259 = vst [vmem:[%s275 + $0x1c] sm:$0xf] %v2131
        %2260 = vst [vmem:[%s275 + $0x20] sm:$0xf] %v2132
        %2261 = vst [vmem:[%s275 + $0x24] sm:$0xf] %v2133
        %2262 = vst [vmem:[%s275 + $0x28] sm:$0xf] %v2134
        %2263 = vst [vmem:[%s275 + $0x2c] sm:$0xf] %v2135
        %2264 = vst [vmem:[%s275 + $0x30] sm:$0xf] %v2136
        %2265 = vst [vmem:[%s275 + $0x34] sm:$0xf] %v2137
        %2266 = vst [vmem:[%s275 + $0x38] sm:$0xf] %v2138
        %2267 = vst [vmem:[%s275 + $0x3c] sm:$0xf] %v2139
        %2268 = vst [vmem:[%s275 + $0x40] sm:$0xf] %v2140
        %2269 = vst [vmem:[%s275 + $0x44] sm:$0xf] %v2141
        %2270 = vst [vmem:[%s275 + $0x48] sm:$0xf] %v2142
        %2271 = vst [vmem:[%s275 + $0x4c] sm:$0xf] %v2143
        %2272 = vst [vmem:[%s275 + $0x50] sm:$0xf] %v2144
        %2273 = vst [vmem:[%s275 + $0x54] sm:$0xf] %v2145
        %2274 = vst [vmem:[%s275 + $0x58] sm:$0xf] %v2146
        %2275 = vst [vmem:[%s275 + $0x5c] sm:$0xf] %v2147
        %2276 = vst [vmem:[%s275 + $0x60] sm:$0xf] %v2148
        %2277 = vst [vmem:[%s275 + $0x64] sm:$0xf] %v2149
        %2278 = vst [vmem:[%s275 + $0x68] sm:$0xf] %v2150
        %2279 = vst [vmem:[%s275 + $0x6c] sm:$0xf] %v2151
        %2280 = vst [vmem:[%s275 + $0x70] sm:$0xf] %v2152
        %2281 = vst [vmem:[%s275 + $0x74] sm:$0xf] %v2153
        %2282 = vst [vmem:[%s275 + $0x78] sm:$0xf] %v2154
        %2283 = vst [vmem:[%s275 + $0x7c] sm:$0xf] %v2155
        %2284 = vst [vmem:[%s275 + $0x80] sm:$0xf] %v2156
        %2285 = vst [vmem:[%s275 + $0x84] sm:$0xf] %v2157
        %2286 = vst [vmem:[%s275 + $0x88] sm:$0xf] %v2158
        %2287 = vst [vmem:[%s275 + $0x8c] sm:$0xf] %v2159
        %2288 = vst [vmem:[%s275 + $0x90] sm:$0xf] %v2160
        %2289 = vst [vmem:[%s275 + $0x94] sm:$0xf] %v2161
        %2290 = vst [vmem:[%s275 + $0x98] sm:$0xf] %v2162
        %2291 = vst [vmem:[%s275 + $0x9c] sm:$0xf] %v2163
        %2292 = vst [vmem:[%s275 + $0xa0] sm:$0xf] %v2164
        %2293 = vst [vmem:[%s275 + $0xa4] sm:$0xf] %v2165
        %2294 = vst [vmem:[%s275 + $0xa8] sm:$0xf] %v2166
        %2295 = vst [vmem:[%s275 + $0xac] sm:$0xf] %v2167
        %2296 = vst [vmem:[%s275 + $0xb0] sm:$0xf] %v2168
        %2297 = vst [vmem:[%s275 + $0xb4] sm:$0xf] %v2169
        %2298 = vst [vmem:[%s275 + $0xb8] sm:$0xf] %v2170
        %2299 = vst [vmem:[%s275 + $0xbc] sm:$0xf] %v2171
        %2300 = vst [vmem:[%s275 + $0xc0] sm:$0xf] %v2172
        %2301 = vst [vmem:[%s275 + $0xc4] sm:$0xf] %v2173
        %2302 = vst [vmem:[%s275 + $0xc8] sm:$0xf] %v2174
        %2303 = vst [vmem:[%s275 + $0xcc] sm:$0xf] %v2175
        %2304 = vst [vmem:[%s275 + $0xd0] sm:$0xf] %v2176
        %2305 = vst [vmem:[%s275 + $0xd4] sm:$0xf] %v2177
        %2306 = vst [vmem:[%s275 + $0xd8] sm:$0xf] %v2178
        %2307 = vst [vmem:[%s275 + $0xdc] sm:$0xf] %v2179
        %2308 = vst [vmem:[%s275 + $0xe0] sm:$0xf] %v2180
        %2309 = vst [vmem:[%s275 + $0xe4] sm:$0xf] %v2181
        %2310 = vst [vmem:[%s275 + $0xe8] sm:$0xf] %v2182
        %2311 = vst [vmem:[%s275 + $0xec] sm:$0xf] %v2183
        %2312 = vst [vmem:[%s275 + $0xf0] sm:$0xf] %v2184
        %2313 = vst [vmem:[%s275 + $0xf4] sm:$0xf] %v2185
        %2314 = vst [vmem:[%s275 + $0xf8] sm:$0xf] %v2186
        %2315 = vst [vmem:[%s275 + $0xfc] sm:$0xf] %v2187
        %s2316 = sand.u32 %s103, 1
        %s2317 = scalar_lea.sflag [#allocation4], %s2316
        %s2318 = sand.u32 %s103, 1
        %s2319 = smul.addr %s2318, 256
        %s2320 = scalar_lea.vmem [#allocation7], %s2319
        %s2321 = sand.u32 %s27, 1
        %s2322 = scalar_lea.sflag [#allocation9], %s2321
        %s2323 = sand.u32 %s129, 1
        %s2324 = smul.addr %s2323, 256
        %s2325 = scalar_lea.vmem [#allocation8], %s2324
        %s2326 = sand.u32 %s27, 1
        %s2327 = scalar_lea.sflag [#allocation9], %s2326
        %s2328 = sand.u32 %s155, 1
        %s2329 = smul.addr %s2328, 256
        %s2330 = scalar_lea.vmem [#allocation10], %s2329
        // Predicated region
        $region41: #{tpu_custom_call.1} parent=31 // pred_check
          %p2331 = pneg %p113
        $region42: #{tpu_custom_call.1} parent=31 // pred_check_branch
          %2333 = sbr.rel (%p2331) target = $region44
        $region43: #{tpu_custom_call.1} parent=31 // pred_region
          %s2334 = smul.u32 64, %s27
          %s2336 = ssub.s32 4096, 4096
          %2337 = vsyncadd %s2317, %s2336
          %s2338 = smul.addr %s2334, 64
          %s2339 = scalar_lea.hbm %s3, %s2338
          %s2340 = sshll.u32 %s2320, 4
          %s2341 = int_to_ptr.vmem [resolvable:$true] %s2340
          %2346 = dma.vmem_to_hbm [thread:$0]  %s2341, 4096, %s2339, %s2317, 64, 64, 4
        $region44: #{tpu_custom_call.1} parent=31 // pred_fallthru
          _
        // Predicated region
        $region45: #{tpu_custom_call.1} parent=31 // pred_check
          %p2347 = pneg %p139
        $region46: #{tpu_custom_call.1} parent=31 // pred_check_branch
          %2349 = sbr.rel (%p2347) target = $region48
        $region47: #{tpu_custom_call.1} parent=31 // pred_region
          %s2350 = smul.u32 64, %s27
          %s2352 = ssub.s32 4096, 4096
          %2353 = vsyncadd %s2322, %s2352
          %s2354 = smul.addr %s2350, 64
          %s2355 = scalar_lea.hbm %s4, %s2354
          %s2356 = sshll.u32 %s2325, 4
          %s2357 = int_to_ptr.vmem [resolvable:$true] %s2356
          %2362 = dma.vmem_to_hbm [thread:$0]  %s2357, 4096, %s2355, %s2322, 64, 64, 4
        $region48: #{tpu_custom_call.1} parent=31 // pred_fallthru
          _
        // Predicated region
        $region49: #{tpu_custom_call.1} parent=31 // pred_check
          %p2363 = pneg %p165
        $region50: #{tpu_custom_call.1} parent=31 // pred_check_branch
          %2365 = sbr.rel (%p2363) target = $region52
        $region51: #{tpu_custom_call.1} parent=31 // pred_region
          %s2366 = smul.u32 64, %s27
          %s2368 = ssub.s32 4096, 4096
          %2369 = vsyncadd %s2327, %s2368
          %s2370 = smul.addr %s2366, 64
          %s2371 = scalar_lea.hbm %s5, %s2370
          %s2372 = sshll.u32 %s2330, 4
          %s2373 = int_to_ptr.vmem [resolvable:$true] %s2372
          %2378 = dma.vmem_to_hbm [thread:$0]  %s2373, 4096, %s2371, %s2327, 64, 64, 4
        $region52: #{tpu_custom_call.1} parent=31 // pred_fallthru
          _
      $region32: #{tpu_custom_call.1} parent=5 // pred_fallthru
        _
      %p2379 = scmp.le.s32.totalorder 2, %s22
      // Predicated region
      $region53: #{tpu_custom_call.1} parent=5 // pred_check
        %p2380 = pneg %p2379
      $region54: #{tpu_custom_call.1} parent=5 // pred_check_branch
        %2382 = sbr.rel (%p2380) target = $region56
      $region55: #{tpu_custom_call.1} parent=5 // pred_region
        %s2383 = ssub.s32 %s22, 2
        // Predicated region
        $region57: #{tpu_custom_call.1} parent=55 // pred_check
          %p2384 = pneg %p119
        $region58: #{tpu_custom_call.1} parent=55 // pred_check_branch
          %2386 = sbr.rel (%p2384) target = $region60
        $region59: #{tpu_custom_call.1} parent=55 // pred_region
          %s2387 = sand.u32 %s104, 1
          %s2388 = scalar_lea.sflag [#allocation4], %s2387
          %s2389 = sand.u32 %s104, 1
          %s2390 = smul.addr %s2389, 256
          %s2391 = scalar_lea.vmem [#allocation7], %s2390
          %2392 = dma.done %s2388, 4096
        $region60: #{tpu_custom_call.1} parent=55 // pred_fallthru
          _
        // Predicated region
        $region61: #{tpu_custom_call.1} parent=55 // pred_check
          %p2393 = pneg %p145
        $region62: #{tpu_custom_call.1} parent=55 // pred_check_branch
          %2395 = sbr.rel (%p2393) target = $region64
        $region63: #{tpu_custom_call.1} parent=55 // pred_region
          %s2396 = sand.u32 %s28, 1
          %s2397 = scalar_lea.sflag [#allocation9], %s2396
          %s2398 = sand.u32 %s130, 1
          %s2399 = smul.addr %s2398, 256
          %s2400 = scalar_lea.vmem [#allocation8], %s2399
          %2401 = dma.done %s2397, 4096
        $region64: #{tpu_custom_call.1} parent=55 // pred_fallthru
          _
        // Predicated region
        $region65: #{tpu_custom_call.1} parent=55 // pred_check
          %p2402 = pneg %p171
        $region66: #{tpu_custom_call.1} parent=55 // pred_check_branch
          %2404 = sbr.rel (%p2402) target = $region68
        $region67: #{tpu_custom_call.1} parent=55 // pred_region
          %s2405 = sand.u32 %s28, 1
          %s2406 = scalar_lea.sflag [#allocation9], %s2405
          %s2407 = sand.u32 %s156, 1
          %s2408 = smul.addr %s2407, 256
          %s2409 = scalar_lea.vmem [#allocation10], %s2408
          %2410 = dma.done %s2406, 4096
        $region68: #{tpu_custom_call.1} parent=55 // pred_fallthru
          _
      $region56: #{tpu_custom_call.1} parent=5 // pred_fallthru
        _
    $region6: #{tpu_custom_call.1} parent=1 // loop_footer
      %s26 = sadd.s32 1, %s22
    $region7: #{tpu_custom_call.1} parent=1 // loop_footer_branch
      %21 = sbr.rel target = $region3
    $region8: #{tpu_custom_call.1} parent=1 // loop_exit
      _
    %2411 = vsyncpa [#allocation3], 1
    %s2412 = scalar_lea.sflag [#allocation3], 1
    %2413 = vsyncpa %s2412, 1
    %2414 = vsyncpa [#allocation6], 1
    %2415 = vsyncpa [#allocation4], 1
    %s2416 = scalar_lea.sflag [#allocation4], 1
    %2417 = vsyncpa %s2416, 1
    %2418 = vsyncpa [#allocation9], 1
    %s2419 = scalar_lea.sflag [#allocation9], 1
    %2420 = vsyncpa %s2419, 1

</llo_original>
